<compile_context>
chip_gen: v5e
topology: v5e:2x2
jax: 0.10.0
libtpu: 0.0.40
codegen_flags: <defaults>
</compile_context>

<pallas_src>
import numpy as np
import jax
import jax.numpy as jnp
from jax.experimental import pallas as pl
from jax.experimental.pallas import tpu as pltpu

# ----- Config (mirrors the PyTorch Config) -----
D_MODEL = 64
CONTEXT = 16
N_HEADS = 8
N_GROUPS = 4
H = D_MODEL // N_HEADS              # 8    head dim
GH = H * N_GROUPS                   # 32   grouped K/V width
SUB = N_HEADS // N_GROUPS           # 2    query heads per KV group
FF = 4 * D_MODEL                    # 256  FFN hidden width
U = CONTEXT // N_HEADS              # 2    output rows spanned by one (head, sub-block)
EPS = 1e-8                          # RMSNorm eps
ROT_W = 128                         # [q(64) | k(32) | pad(32)] rotated block width
PROJ_W = 2 * ROT_W + N_GROUPS * D_MODEL   # 512 fused projection width
NEG = -1e30                         # additive mask value (finite, exp -> 0)

assert CONTEXT % N_HEADS == 0


# ---------------------------------------------------------------------------
# The fused decoder-layer kernel (single gridless pallas_call)
# ---------------------------------------------------------------------------
def _decoder_layer_kernel(x_ref, w_qkv_ref, cos_ref, sin_ref, amask_ref,
                          msel_ref, merge_ref, w_up_ref, w2_ref, beta_ref,
                          out_ref):
    B, T, C = x_ref.shape
    x = x_ref[...].reshape(B * T, C)

    # ---- RMSNorm 1 (eps added OUTSIDE the sqrt, exactly as the reference) ----
    rms = jnp.sqrt(jnp.mean(x * x, axis=-1, keepdims=True))
    xn = x * pl.reciprocal(rms + EPS, approx=True)

    # ---- ONE fused projection: [q|k|pad] [q_sw|k_sw|pad] [v replicated] ----
    proj = jnp.dot(xn, w_qkv_ref[...], preferred_element_type=jnp.float32)
    main = proj[:, :ROT_W]                 # (B*T, 128)
    partner = proj[:, ROT_W:2 * ROT_W]     # pair-swapped columns (RoPE partner)
    vrep = proj[:, 2 * ROT_W:]             # (B*T, 256) v replicated per channel block

    # RoPE as pure VPU math:
    #   rot[2i]   =  p[2i]*cos + p[2i+1]*sin
    #   rot[2i+1] = -p[2i]*sin + p[2i+1]*cos   (sign folded into the sin table)
    # q columns already carry 1/sqrt(H) (folded into the weights host-side).
    rot = main * cos_ref[...] + partner * sin_ref[...]

    # ---- stack (batch, head) / (batch, group) on the row axis ----
    qs = jnp.concatenate(
        [rot[b * T:(b + 1) * T, n * H:(n + 1) * H]
         for b in range(B) for n in range(N_HEADS)], axis=0)        # (B*8*T, H)
    ks = jnp.concatenate(
        [rot[b * T:(b + 1) * T, D_MODEL + g * H:D_MODEL + (g + 1) * H]
         for b in range(B) for g in range(N_GROUPS)], axis=0)       # (B*4*T, H)
    vs = jnp.concatenate(
        [vrep[b * T:(b + 1) * T, g * D_MODEL:(g + 1) * D_MODEL]
         for b in range(B) for g in range(N_GROUPS)], axis=0)       # (B*4*T, C)

    # ---- single masked attention over the whole (batch, head) stack ----
    s = jnp.einsum('ph,jh->pj', qs, ks, preferred_element_type=jnp.float32)
    s = s + amask_ref[...]                 # causal + group + batch block mask
    m = jnp.max(s, axis=-1, keepdims=True)
    e = jnp.exp(s - m)
    den = jnp.sum(e, axis=-1, keepdims=True)
    o = jnp.dot(e, vs, preferred_element_type=jnp.float32)          # (B*8*T, C)
    o = o * pl.reciprocal(den, approx=True)          # softmax normalize once
    o = o * msel_ref[...]                            # keep row's own channel block
    # scrambled head merge == ONE constant 0/1 matmul gathering 8 rows per output row
    attn = jnp.dot(merge_ref[...], o, preferred_element_type=jnp.float32)  # (B*T, C)

    # ---- residual -> RMSNorm 2 -> SwiGLU FFN (W1 | V fused) -> residual ----
    x1 = attn + x
    rms1 = jnp.sqrt(jnp.mean(x1 * x1, axis=-1, keepdims=True))
    xn1 = x1 * pl.reciprocal(rms1 + EPS, approx=True)
    beta = beta_ref[0]
    hcat = jnp.dot(xn1, w_up_ref[...], preferred_element_type=jnp.float32)  # (B*T, 2*FF)
    h1 = hcat[:, :FF]
    hv = hcat[:, FF:]
    gate = (h1 * jax.nn.sigmoid(h1 * beta)) * hv
    y = jnp.dot(gate, w2_ref[...], preferred_element_type=jnp.float32)
    out_ref[...] = (y + x1).reshape(B, T, C)


# ---------------------------------------------------------------------------
# pallas_call wrapper (single launch, whole arrays resident in VMEM)
# NOTE: for v7x with large B, add a "parallel" batch grid axis instead of the
#       gridless call to use both TensorCores; unnecessary at B=2.
# ---------------------------------------------------------------------------
def decoder_layer_forward(x, fused):
    B, T, C = x.shape
    assert T == CONTEXT and C == D_MODEL and B == fused['batch']
    vmem = pl.BlockSpec(memory_space=pltpu.MemorySpace.VMEM)
    smem = pl.BlockSpec(memory_space=pltpu.MemorySpace.SMEM)
    return pl.pallas_call(
        _decoder_layer_kernel,
        out_shape=jax.ShapeDtypeStruct((B, T, C), jnp.float32),
        in_specs=[vmem, vmem, vmem, vmem, vmem, vmem, vmem, vmem, vmem, smem],
        out_specs=vmem,
    )(x, fused['w_qkv'], fused['rot_cos'], fused['rot_sin'], fused['amask'],
      fused['msel'], fused['merge'], fused['w_up'], fused['w2'], fused['beta'])


# ---------------------------------------------------------------------------
# One-time host preprocessing: fused weights + all constant matrices
# ---------------------------------------------------------------------------
def _rope_tables():
    """(T, 128) cos/sin tables matching the [q(64)|k(32)|pad(32)] layout,
    reproducing the reference's theta schedule verbatim."""
    def tabs(width):
        cos = np.zeros((CONTEXT, width))
        sin = np.zeros((CONTEXT, width))
        for pos in range(CONTEXT):
            for i in range(width // 2):
                theta = 10000.0 ** (-(2 * (i - 1))) / width   # verbatim from reference
                c, s = np.cos(pos * theta), np.sin(pos * theta)
                cos[pos, 2 * i] = c
                cos[pos, 2 * i + 1] = c
                sin[pos, 2 * i] = s
                sin[pos, 2 * i + 1] = -s
        return cos, sin

    cq, sq = tabs(D_MODEL)
    ck, sk = tabs(GH)
    pad = np.zeros((CONTEXT, ROT_W - D_MODEL - GH))
    return (np.concatenate([cq, ck, pad], axis=1),
            np.concatenate([sq, sk, pad], axis=1))


def _swap_pairs_cols(w):
    """Swap adjacent output columns: result[:, 2i] = w[:, 2i+1] and vice versa."""
    i, o = w.shape
    return np.ascontiguousarray(w.reshape(i, o // 2, 2)[:, :, ::-1].reshape(i, o))


def _attention_mask(batch):
    """Additive mask (B*8*T, B*4*T): 0 where same batch, same KV group and
    j <= i (causal); -1e30 elsewhere."""
    rows = batch * N_HEADS * CONTEXT
    cols = batch * N_GROUPS * CONTEXT
    p = np.arange(rows)
    b_p = p // (N_HEADS * CONTEXT)
    n_p = (p // CONTEXT) % N_HEADS
    i_p = p % CONTEXT
    jj = np.arange(cols)
    b_j = jj // (N_GROUPS * CONTEXT)
    g_j = (jj // CONTEXT) % N_GROUPS
    j_j = jj % CONTEXT
    ok = ((b_p[:, None] == b_j[None, :]) &
          ((n_p[:, None] // SUB) == g_j[None, :]) &
          (j_j[None, :] <= i_p[:, None]))
    return np.where(ok, 0.0, NEG).astype(np.float32)


def _msel(batch):
    """0/1 selector (B*8*T, C): row p (query position i) keeps only channel
    block i % 8 of the replicated PV output."""
    rows = batch * N_HEADS * CONTEXT
    p = np.arange(rows)
    i_lo = (p % CONTEXT) % H
    cc = np.arange(D_MODEL)
    return (cc[None, :] // H == i_lo[:, None]).astype(np.float32)


def _merge_matrix(batch):
    """0/1 merge matrix (B*T, B*8*T) reproducing the reference's scrambled
    head merge (.transpose(1,2).contiguous().view(b,t,c)):
    output row (b, tt) sums the 8 rows {n*T + u*8 + il} of head n = g*SUB + s,
    where tt = (s*NG + g)*U + u (channel placement handled by _msel)."""
    R = batch * CONTEXT
    P = batch * N_HEADS * CONTEXT
    mm = np.zeros((R, P), np.float32)
    for b in range(batch):
        for tt in range(CONTEXT):
            u = tt % U
            rest = tt // U
            g = rest % N_GROUPS
            s = rest // N_GROUPS
            n = g * SUB + s
            base = b * N_HEADS * CONTEXT + n * CONTEXT + u * N_HEADS
            mm[b * CONTEXT + tt, base:base + N_HEADS] = 1.0
    return mm


def fuse_params(p, batch):
    """One-time host preprocessing of the base parameters for the kernel."""
    scale = 1.0 / np.sqrt(H)                       # fold attention scale into Wq
    wq = np.asarray(p['wq'], np.float64) * scale
    wk = np.asarray(p['wk'], np.float64)
    wv = np.asarray(p['wv'], np.float64)
    pad = np.zeros((D_MODEL, ROT_W - D_MODEL - GH))
    # V replicated across the 8 output channel blocks of each group (folds the
    # old per-head "widen" matmuls into the projection weight).
    wv_rep = np.zeros((D_MODEL, N_GROUPS * D_MODEL))
    for g in range(N_GROUPS):
        blk = wv[:, g * H:(g + 1) * H]
        for cb in range(D_MODEL // H):
            wv_rep[:, g * D_MODEL + cb * H: g * D_MODEL + (cb + 1) * H] = blk
    w_qkv = np.concatenate(
        [wq, wk, pad, _swap_pairs_cols(wq), _swap_pairs_cols(wk), pad, wv_rep],
        axis=1)                                                     # (64, 512)
    assert w_qkv.shape == (D_MODEL, PROJ_W)

    cos, sin = _rope_tables()
    w_up = np.concatenate([np.asarray(p['w1']), np.asarray(p['wvf'])], axis=1)

    return {
        'w_qkv':   jnp.asarray(w_qkv, jnp.float32),
        'rot_cos': jnp.asarray(np.tile(cos, (batch, 1)), jnp.float32),
        'rot_sin': jnp.asarray(np.tile(sin, (batch, 1)), jnp.float32),
        'amask':   jnp.asarray(_attention_mask(batch), jnp.float32),
        'msel':    jnp.asarray(_msel(batch), jnp.float32),
        'merge':   jnp.asarray(_merge_matrix(batch), jnp.float32),
        'w_up':    jnp.asarray(w_up, jnp.float32),
        'w2':      jnp.asarray(p['w2'], jnp.float32),
        'beta':    jnp.asarray(p['beta'], jnp.float32),
        'batch':   batch,
    }


# ---------------------------------------------------------------------------
# Parameter init + dense rotary matrices (only for the pure-JAX reference)
# ---------------------------------------------------------------------------
def _rotary_matrices():
    r = np.zeros((CONTEXT, D_MODEL, D_MODEL), dtype=np.float64)
    rk = np.zeros((CONTEXT, GH, GH), dtype=np.float64)
    for pos in range(CONTEXT):
        for i in range(D_MODEL // 2):
            theta = 10000.0 ** (-(2 * (i - 1))) / D_MODEL
            r[pos, 2 * i, 2 * i] = np.cos(pos * theta)
            r[pos, 2 * i, 2 * i + 1] = -np.sin(pos * theta)
            r[pos, 2 * i + 1, 2 * i] = np.sin(pos * theta)
            r[pos, 2 * i + 1, 2 * i + 1] = np.cos(pos * theta)
        for i in range(GH // 2):
            theta = 10000.0 ** (-(2 * (i - 1))) / GH
            rk[pos, 2 * i, 2 * i] = np.cos(pos * theta)
            rk[pos, 2 * i, 2 * i + 1] = -np.sin(pos * theta)
            rk[pos, 2 * i + 1, 2 * i] = np.sin(pos * theta)
            rk[pos, 2 * i + 1, 2 * i + 1] = np.cos(pos * theta)
    return jnp.asarray(r, jnp.float32), jnp.asarray(rk, jnp.float32)


def init_params(key):
    ks = jax.random.split(key, 6)
    s = 0.05
    r, rk = _rotary_matrices()
    return {
        'wq':  jax.random.normal(ks[0], (D_MODEL, D_MODEL), jnp.float32) * s,
        'wk':  jax.random.normal(ks[1], (D_MODEL, GH), jnp.float32) * s,
        'wv':  jax.random.normal(ks[2], (D_MODEL, GH), jnp.float32) * s,
        'w1':  jax.random.normal(ks[3], (D_MODEL, 4 * D_MODEL), jnp.float32) * s,
        'wvf': jax.random.normal(ks[4], (D_MODEL, 4 * D_MODEL), jnp.float32) * s,
        'w2':  jax.random.normal(ks[5], (4 * D_MODEL, D_MODEL), jnp.float32) * s,
        'beta': jnp.ones((1,), jnp.float32),
        'r': r,
        'rk': rk,
    }


# ---------------------------------------------------------------------------
# Pure-JAX reference (mirrors the PyTorch forward, incl. the scrambled merge)
# ---------------------------------------------------------------------------
def reference_forward(x, p):
    PR = jax.lax.Precision.HIGHEST
    B, T, C = x.shape
    rms = jnp.sqrt(jnp.mean(x * x, axis=-1, keepdims=True))
    xn = x / (rms + EPS)
    q = jnp.dot(xn, p['wq'], precision=PR)
    k = jnp.dot(xn, p['wk'], precision=PR)
    v = jnp.dot(xn, p['wv'], precision=PR)
    q = jnp.einsum('btc,tcd->btd', q, p['r'], precision=PR)
    k = jnp.einsum('btc,tcd->btd', k, p['rk'], precision=PR)
    q = q.reshape(B, T, N_GROUPS, SUB, H).transpose(0, 2, 3, 1, 4)   # (B,NG,SUB,T,H)
    k = k.reshape(B, T, N_GROUPS, H).transpose(0, 2, 1, 3)           # (B,NG,T,H)
    v = v.reshape(B, T, N_GROUPS, H).transpose(0, 2, 1, 3)
    att = jnp.einsum('bgsih,bgjh->bgsij', q, k, precision=PR) / (H ** 0.5)
    mask = jnp.tril(jnp.ones((T, T)))
    att = jnp.where(mask[None, None, None] == 0, -jnp.inf, att)
    pa = jax.nn.softmax(att, axis=-1)
    o = jnp.einsum('bgsij,bgjh->bgsih', pa, v, precision=PR)         # (B,NG,SUB,T,H)
    attn = o.transpose(0, 2, 1, 3, 4).reshape(B, T, C)               # scrambled merge
    x1 = attn + x
    rms = jnp.sqrt(jnp.mean(x1 * x1, axis=-1, keepdims=True))
    xn1 = x1 / (rms + EPS)
    h1 = jnp.dot(xn1, p['w1'], precision=PR)
    hv = jnp.dot(xn1, p['wvf'], precision=PR)
    swish = h1 * jax.nn.sigmoid(h1 * p['beta'][0])
    return jnp.dot(swish * hv, p['w2'], precision=PR) + x1


if __name__ == "__main__":
    key = jax.random.PRNGKey(0)
    pkey, xkey = jax.random.split(key)
    params = init_params(pkey)

    B = 2
    fused = fuse_params(params, B)
    x = jax.random.normal(xkey, (B, CONTEXT, D_MODEL), jnp.float32)

    out = jax.block_until_ready(decoder_layer_forward(x, fused))

    ref = reference_forward(x, params)
    assert out.shape == (B, CONTEXT, D_MODEL), out.shape
    assert bool(jnp.all(jnp.isfinite(out)))
    if not jnp.allclose(out, ref, atol=3e-3, rtol=3e-3):
        raise AssertionError(
            f"mismatch vs reference, max abs err = {float(jnp.max(jnp.abs(out - ref)))}")
    print("KERNEL_OK")
</pallas_src>

<mosaic_0001>
module attributes {stable_mosaic.version = 11 : i64} {
  func.func @_decoder_layer_kernel(%arg0: memref<2x16x64xf32, #tpu.memory_space<vmem>>, %arg1: memref<64x512xf32, #tpu.memory_space<vmem>>, %arg2: memref<32x128xf32, #tpu.memory_space<vmem>>, %arg3: memref<32x128xf32, #tpu.memory_space<vmem>>, %arg4: memref<256x128xf32, #tpu.memory_space<vmem>>, %arg5: memref<256x64xf32, #tpu.memory_space<vmem>>, %arg6: memref<32x256xf32, #tpu.memory_space<vmem>>, %arg7: memref<64x512xf32, #tpu.memory_space<vmem>>, %arg8: memref<256x64xf32, #tpu.memory_space<vmem>>, %arg9: memref<1xf32, #tpu.memory_space<smem>>, %arg10: memref<2x16x64xf32, #tpu.memory_space<vmem>>) attributes {dimension_semantics = [], scalar_prefetch = 0 : i64, scratch_operands = 0 : i64, tpu.core_type = #tpu.core_type<tc>} {
    %c0 = arith.constant 0 : index
    %c0_0 = arith.constant 0 : index
    %c0_1 = arith.constant 0 : index
    %0 = vector.load %arg0[%c0, %c0_0, %c0_1] : memref<2x16x64xf32, #tpu.memory_space<vmem>>, vector<2x16x64xf32>
    %1 = vector.shape_cast %0 : vector<2x16x64xf32> to vector<32x64xf32>
    %2 = arith.mulf %1, %1 : vector<32x64xf32>
    %cst = arith.constant dense<0.000000e+00> : vector<32xf32>
    %3 = vector.multi_reduction <add>, %2, %cst [1] : vector<32x64xf32> to vector<32xf32>
    %4 = vector.shape_cast %3 : vector<32xf32> to vector<32x1xf32>
    %cst_2 = arith.constant 6.400000e+01 : f32
    %5 = vector.broadcast %cst_2 : f32 to vector<32x1xf32>
    %6 = arith.divf %4, %5 : vector<32x1xf32>
    %7 = math.sqrt %6 : vector<32x1xf32>
    %cst_3 = arith.constant 9.99999993E-9 : f32
    %8 = vector.broadcast %cst_3 : f32 to vector<32x1xf32>
    %9 = arith.addf %7, %8 : vector<32x1xf32>
    %10 = tpu.reciprocal %9 {approx = true} : vector<32x1xf32> -> vector<32x1xf32>
    %11 = vector.broadcast %10 : vector<32x1xf32> to vector<32x64xf32>
    %12 = arith.mulf %1, %11 : vector<32x64xf32>
    %c0_4 = arith.constant 0 : index
    %c0_5 = arith.constant 0 : index
    %13 = vector.load %arg1[%c0_4, %c0_5] : memref<64x512xf32, #tpu.memory_space<vmem>>, vector<64x512xf32>
    %cst_6 = arith.constant dense<0.000000e+00> : vector<32x512xf32>
    %14 = tpu.matmul %12, %13, %cst_6 {dimension_numbers = #tpu.dot_dimension_numbers<[1], [0], [0], [1], [0, 0, 1, 1], [], []>} : vector<32x64xf32>, vector<64x512xf32>, vector<32x512xf32> -> vector<32x512xf32>
    %15 = vector.extract_strided_slice %14 {offsets = [0, 0], sizes = [32, 128], strides = [1, 1]} : vector<32x512xf32> to vector<32x128xf32>
    %16 = vector.extract_strided_slice %14 {offsets = [0, 128], sizes = [32, 128], strides = [1, 1]} : vector<32x512xf32> to vector<32x128xf32>
    %17 = vector.extract_strided_slice %14 {offsets = [0, 256], sizes = [32, 256], strides = [1, 1]} : vector<32x512xf32> to vector<32x256xf32>
    %c0_7 = arith.constant 0 : index
    %c0_8 = arith.constant 0 : index
    %18 = vector.load %arg2[%c0_7, %c0_8] : memref<32x128xf32, #tpu.memory_space<vmem>>, vector<32x128xf32>
    %19 = arith.mulf %15, %18 : vector<32x128xf32>
    %c0_9 = arith.constant 0 : index
    %c0_10 = arith.constant 0 : index
    %20 = vector.load %arg3[%c0_9, %c0_10] : memref<32x128xf32, #tpu.memory_space<vmem>>, vector<32x128xf32>
    %21 = arith.mulf %16, %20 : vector<32x128xf32>
    %22 = arith.addf %19, %21 : vector<32x128xf32>
    %23 = vector.extract_strided_slice %22 {offsets = [0, 0], sizes = [16, 8], strides = [1, 1]} : vector<32x128xf32> to vector<16x8xf32>
    %24 = vector.extract_strided_slice %22 {offsets = [0, 8], sizes = [16, 8], strides = [1, 1]} : vector<32x128xf32> to vector<16x8xf32>
    %25 = vector.extract_strided_slice %22 {offsets = [0, 16], sizes = [16, 8], strides = [1, 1]} : vector<32x128xf32> to vector<16x8xf32>
    %26 = vector.extract_strided_slice %22 {offsets = [0, 24], sizes = [16, 8], strides = [1, 1]} : vector<32x128xf32> to vector<16x8xf32>
    %27 = vector.extract_strided_slice %22 {offsets = [0, 32], sizes = [16, 8], strides = [1, 1]} : vector<32x128xf32> to vector<16x8xf32>
    %28 = vector.extract_strided_slice %22 {offsets = [0, 40], sizes = [16, 8], strides = [1, 1]} : vector<32x128xf32> to vector<16x8xf32>
    %29 = vector.extract_strided_slice %22 {offsets = [0, 48], sizes = [16, 8], strides = [1, 1]} : vector<32x128xf32> to vector<16x8xf32>
    %30 = vector.extract_strided_slice %22 {offsets = [0, 56], sizes = [16, 8], strides = [1, 1]} : vector<32x128xf32> to vector<16x8xf32>
    %31 = vector.extract_strided_slice %22 {offsets = [16, 0], sizes = [16, 8], strides = [1, 1]} : vector<32x128xf32> to vector<16x8xf32>
    %32 = vector.extract_strided_slice %22 {offsets = [16, 8], sizes = [16, 8], strides = [1, 1]} : vector<32x128xf32> to vector<16x8xf32>
    %33 = vector.extract_strided_slice %22 {offsets = [16, 16], sizes = [16, 8], strides = [1, 1]} : vector<32x128xf32> to vector<16x8xf32>
    %34 = vector.extract_strided_slice %22 {offsets = [16, 24], sizes = [16, 8], strides = [1, 1]} : vector<32x128xf32> to vector<16x8xf32>
    %35 = vector.extract_strided_slice %22 {offsets = [16, 32], sizes = [16, 8], strides = [1, 1]} : vector<32x128xf32> to vector<16x8xf32>
    %36 = vector.extract_strided_slice %22 {offsets = [16, 40], sizes = [16, 8], strides = [1, 1]} : vector<32x128xf32> to vector<16x8xf32>
    %37 = vector.extract_strided_slice %22 {offsets = [16, 48], sizes = [16, 8], strides = [1, 1]} : vector<32x128xf32> to vector<16x8xf32>
    %38 = vector.extract_strided_slice %22 {offsets = [16, 56], sizes = [16, 8], strides = [1, 1]} : vector<32x128xf32> to vector<16x8xf32>
    %39 = tpu.concatenate %23, %24, %25, %26, %27, %28, %29, %30, %31, %32, %33, %34, %35, %36, %37, %38 in 0 : vector<16x8xf32>, vector<16x8xf32>, vector<16x8xf32>, vector<16x8xf32>, vector<16x8xf32>, vector<16x8xf32>, vector<16x8xf32>, vector<16x8xf32>, vector<16x8xf32>, vector<16x8xf32>, vector<16x8xf32>, vector<16x8xf32>, vector<16x8xf32>, vector<16x8xf32>, vector<16x8xf32>, vector<16x8xf32> -> vector<256x8xf32>
    %40 = vector.extract_strided_slice %22 {offsets = [0, 64], sizes = [16, 8], strides = [1, 1]} : vector<32x128xf32> to vector<16x8xf32>
    %41 = vector.extract_strided_slice %22 {offsets = [0, 72], sizes = [16, 8], strides = [1, 1]} : vector<32x128xf32> to vector<16x8xf32>
    %42 = vector.extract_strided_slice %22 {offsets = [0, 80], sizes = [16, 8], strides = [1, 1]} : vector<32x128xf32> to vector<16x8xf32>
    %43 = vector.extract_strided_slice %22 {offsets = [0, 88], sizes = [16, 8], strides = [1, 1]} : vector<32x128xf32> to vector<16x8xf32>
    %44 = vector.extract_strided_slice %22 {offsets = [16, 64], sizes = [16, 8], strides = [1, 1]} : vector<32x128xf32> to vector<16x8xf32>
    %45 = vector.extract_strided_slice %22 {offsets = [16, 72], sizes = [16, 8], strides = [1, 1]} : vector<32x128xf32> to vector<16x8xf32>
    %46 = vector.extract_strided_slice %22 {offsets = [16, 80], sizes = [16, 8], strides = [1, 1]} : vector<32x128xf32> to vector<16x8xf32>
    %47 = vector.extract_strided_slice %22 {offsets = [16, 88], sizes = [16, 8], strides = [1, 1]} : vector<32x128xf32> to vector<16x8xf32>
    %48 = tpu.concatenate %40, %41, %42, %43, %44, %45, %46, %47 in 0 : vector<16x8xf32>, vector<16x8xf32>, vector<16x8xf32>, vector<16x8xf32>, vector<16x8xf32>, vector<16x8xf32>, vector<16x8xf32>, vector<16x8xf32> -> vector<128x8xf32>
    %49 = vector.extract_strided_slice %17 {offsets = [0, 0], sizes = [16, 64], strides = [1, 1]} : vector<32x256xf32> to vector<16x64xf32>
    %50 = vector.extract_strided_slice %17 {offsets = [0, 64], sizes = [16, 64], strides = [1, 1]} : vector<32x256xf32> to vector<16x64xf32>
    %51 = vector.extract_strided_slice %17 {offsets = [0, 128], sizes = [16, 64], strides = [1, 1]} : vector<32x256xf32> to vector<16x64xf32>
    %52 = vector.extract_strided_slice %17 {offsets = [0, 192], sizes = [16, 64], strides = [1, 1]} : vector<32x256xf32> to vector<16x64xf32>
    %53 = vector.extract_strided_slice %17 {offsets = [16, 0], sizes = [16, 64], strides = [1, 1]} : vector<32x256xf32> to vector<16x64xf32>
    %54 = vector.extract_strided_slice %17 {offsets = [16, 64], sizes = [16, 64], strides = [1, 1]} : vector<32x256xf32> to vector<16x64xf32>
    %55 = vector.extract_strided_slice %17 {offsets = [16, 128], sizes = [16, 64], strides = [1, 1]} : vector<32x256xf32> to vector<16x64xf32>
    %56 = vector.extract_strided_slice %17 {offsets = [16, 192], sizes = [16, 64], strides = [1, 1]} : vector<32x256xf32> to vector<16x64xf32>
    %57 = tpu.concatenate %49, %50, %51, %52, %53, %54, %55, %56 in 0 : vector<16x64xf32>, vector<16x64xf32>, vector<16x64xf32>, vector<16x64xf32>, vector<16x64xf32>, vector<16x64xf32>, vector<16x64xf32>, vector<16x64xf32> -> vector<128x64xf32>
    "tpu.trace_start"() <{level = 10 : i32, message = "ph,jh->pj"}> : () -> ()
    %cst_11 = arith.constant dense<0.000000e+00> : vector<256x128xf32>
    %58 = tpu.matmul %39, %48, %cst_11 {dimension_numbers = #tpu.dot_dimension_numbers<[1], [1], [0], [0], [0, 0, 1, 0], [], []>} : vector<256x8xf32>, vector<128x8xf32>, vector<256x128xf32> -> vector<256x128xf32>
    "tpu.trace_stop"() : () -> ()
    %c0_12 = arith.constant 0 : index
    %c0_13 = arith.constant 0 : index
    %59 = vector.load %arg4[%c0_12, %c0_13] : memref<256x128xf32, #tpu.memory_space<vmem>>, vector<256x128xf32>
    %60 = arith.addf %58, %59 : vector<256x128xf32>
    %cst_14 = arith.constant dense<0xFF800000> : vector<256xf32>
    %61 = vector.multi_reduction <maximumf>, %60, %cst_14 [1] : vector<256x128xf32> to vector<256xf32>
    %62 = vector.shape_cast %61 : vector<256xf32> to vector<256x1xf32>
    %63 = vector.broadcast %62 : vector<256x1xf32> to vector<256x128xf32>
    %64 = arith.subf %60, %63 : vector<256x128xf32>
    %65 = math.exp %64 : vector<256x128xf32>
    %cst_15 = arith.constant dense<0.000000e+00> : vector<256xf32>
    %66 = vector.multi_reduction <add>, %65, %cst_15 [1] : vector<256x128xf32> to vector<256xf32>
    %67 = vector.shape_cast %66 : vector<256xf32> to vector<256x1xf32>
    %cst_16 = arith.constant dense<0.000000e+00> : vector<256x64xf32>
    %68 = tpu.matmul %65, %57, %cst_16 {dimension_numbers = #tpu.dot_dimension_numbers<[1], [0], [0], [1], [0, 0, 1, 1], [], []>} : vector<256x128xf32>, vector<128x64xf32>, vector<256x64xf32> -> vector<256x64xf32>
    %69 = tpu.reciprocal %67 {approx = true} : vector<256x1xf32> -> vector<256x1xf32>
    %70 = vector.broadcast %69 : vector<256x1xf32> to vector<256x64xf32>
    %71 = arith.mulf %68, %70 : vector<256x64xf32>
    %c0_17 = arith.constant 0 : index
    %c0_18 = arith.constant 0 : index
    %72 = vector.load %arg5[%c0_17, %c0_18] : memref<256x64xf32, #tpu.memory_space<vmem>>, vector<256x64xf32>
    %73 = arith.mulf %71, %72 : vector<256x64xf32>
    %c0_19 = arith.constant 0 : index
    %c0_20 = arith.constant 0 : index
    %74 = vector.load %arg6[%c0_19, %c0_20] : memref<32x256xf32, #tpu.memory_space<vmem>>, vector<32x256xf32>
    %cst_21 = arith.constant dense<0.000000e+00> : vector<32x64xf32>
    %75 = tpu.matmul %74, %73, %cst_21 {dimension_numbers = #tpu.dot_dimension_numbers<[1], [0], [0], [1], [0, 0, 1, 1], [], []>} : vector<32x256xf32>, vector<256x64xf32>, vector<32x64xf32> -> vector<32x64xf32>
    %76 = arith.addf %75, %1 : vector<32x64xf32>
    %77 = arith.mulf %76, %76 : vector<32x64xf32>
    %cst_22 = arith.constant dense<0.000000e+00> : vector<32xf32>
    %78 = vector.multi_reduction <add>, %77, %cst_22 [1] : vector<32x64xf32> to vector<32xf32>
    %79 = vector.shape_cast %78 : vector<32xf32> to vector<32x1xf32>
    %cst_23 = arith.constant 6.400000e+01 : f32
    %80 = vector.broadcast %cst_23 : f32 to vector<32x1xf32>
    %81 = arith.divf %79, %80 : vector<32x1xf32>
    %82 = math.sqrt %81 : vector<32x1xf32>
    %cst_24 = arith.constant 9.99999993E-9 : f32
    %83 = vector.broadcast %cst_24 : f32 to vector<32x1xf32>
    %84 = arith.addf %82, %83 : vector<32x1xf32>
    %85 = tpu.reciprocal %84 {approx = true} : vector<32x1xf32> -> vector<32x1xf32>
    %86 = vector.broadcast %85 : vector<32x1xf32> to vector<32x64xf32>
    %87 = arith.mulf %76, %86 : vector<32x64xf32>
    %c0_25 = arith.constant 0 : index
    %88 = memref.load %arg9[%c0_25] : memref<1xf32, #tpu.memory_space<smem>>
    %c0_26 = arith.constant 0 : index
    %c0_27 = arith.constant 0 : index
    %89 = vector.load %arg7[%c0_26, %c0_27] : memref<64x512xf32, #tpu.memory_space<vmem>>, vector<64x512xf32>
    %cst_28 = arith.constant dense<0.000000e+00> : vector<32x512xf32>
    %90 = tpu.matmul %87, %89, %cst_28 {dimension_numbers = #tpu.dot_dimension_numbers<[1], [0], [0], [1], [0, 0, 1, 1], [], []>} : vector<32x64xf32>, vector<64x512xf32>, vector<32x512xf32> -> vector<32x512xf32>
    %91 = vector.extract_strided_slice %90 {offsets = [0, 0], sizes = [32, 256], strides = [1, 1]} : vector<32x512xf32> to vector<32x256xf32>
    %92 = vector.extract_strided_slice %90 {offsets = [0, 256], sizes = [32, 256], strides = [1, 1]} : vector<32x512xf32> to vector<32x256xf32>
    %93 = vector.broadcast %88 : f32 to vector<32x256xf32>
    %94 = arith.mulf %91, %93 : vector<32x256xf32>
    %95 = arith.negf %94 : vector<32x256xf32>
    %96 = math.exp %95 : vector<32x256xf32>
    %cst_29 = arith.constant 1.000000e+00 : f32
    %97 = vector.broadcast %cst_29 : f32 to vector<32x256xf32>
    %98 = arith.addf %97, %96 : vector<32x256xf32>
    %99 = arith.divf %97, %98 : vector<32x256xf32>
    %100 = arith.mulf %91, %99 : vector<32x256xf32>
    %101 = arith.mulf %100, %92 : vector<32x256xf32>
    %c0_30 = arith.constant 0 : index
    %c0_31 = arith.constant 0 : index
    %102 = vector.load %arg8[%c0_30, %c0_31] : memref<256x64xf32, #tpu.memory_space<vmem>>, vector<256x64xf32>
    %cst_32 = arith.constant dense<0.000000e+00> : vector<32x64xf32>
    %103 = tpu.matmul %101, %102, %cst_32 {dimension_numbers = #tpu.dot_dimension_numbers<[1], [0], [0], [1], [0, 0, 1, 1], [], []>} : vector<32x256xf32>, vector<256x64xf32>, vector<32x64xf32> -> vector<32x64xf32>
    %104 = arith.addf %103, %76 : vector<32x64xf32>
    %105 = vector.shape_cast %104 : vector<32x64xf32> to vector<2x16x64xf32>
    %c0_33 = arith.constant 0 : index
    %c0_34 = arith.constant 0 : index
    %c0_35 = arith.constant 0 : index
    %106 = vector.load %arg10[%c0_33, %c0_34, %c0_35] : memref<2x16x64xf32, #tpu.memory_space<vmem>>, vector<2x16x64xf32>
    tpu.vector_store %arg10[%c0_33, %c0_34, %c0_35], %105 {strides = array<i32>} : memref<2x16x64xf32, #tpu.memory_space<vmem>>, vector<2x16x64xf32>,
    return
  }
}

</mosaic_0001>

<llo_original>
// kernel: tpu_custom_call.1
$region0: #{tpu_custom_call.1}
  #allocation0 [shape = 'u32[]', space=smem, size = 0x4, offset = 0x4, fixed_abs, tag = 'smem constant byte address 0x4 - core index']
  #allocation1 [shape = 'u32[72,128]{1,0:T(1,128)}', space=vmem, size = 0x9000, scoped, tag = 'internal scratch']
  #allocation2 [shape = 'f32[1]{0:T(128)S(6)}', space=smem, size = 0x200, scoped, tag = 'scoped memory for tpu_custom_call.1']
  %s0 = inlined_call_operand.vmem [shape: f32[2,16,64], index: 0, kind: input, shape index: {}]
  %s1 = inlined_call_operand.vmem [shape: f32[64,512], index: 1, kind: input, shape index: {}]
  %s2 = inlined_call_operand.vmem [shape: f32[32,128], index: 2, kind: input, shape index: {}]
  %s3 = inlined_call_operand.hbm [shape: f32[32,128], index: 3, kind: input, shape index: {}]
  %s4 = inlined_call_operand.vmem [shape: f32[256,128], index: 4, kind: input, shape index: {}]
  %s5 = inlined_call_operand.vmem [shape: f32[256,64], index: 5, kind: input, shape index: {}]
  %s6 = inlined_call_operand.vmem [shape: f32[32,256], index: 6, kind: input, shape index: {}]
  %s7 = inlined_call_operand.hbm [shape: f32[64,512], index: 7, kind: input, shape index: {}]
  %s8 = inlined_call_operand.vmem [shape: f32[256,64], index: 8, kind: input, shape index: {}]
  %s9 = inlined_call_operand.<no memory space> [shape: f32[1], index: 9, kind: input, shape index: {}]
  %s10 = inlined_call_operand.hbm [shape: f32[2,16,64], index: 10, kind: output, shape index: {}]
  %s11 = sld [smem:[#allocation0]]
  $region58: #{tpu_custom_call.1} parent=0
    _
  %s13 = ssub.s32 1, %s11
  %s14 = scalar_select 0, %s13, %s11
  %15 = sst [smem:[#allocation2]] %s9
  $region1: #{tpu_custom_call.1} parent=0
    #allocation3 [shape = 'u8[16384]{0}', space=vmem, size = 0x4000, scoped, tag = 'input window, operand 3, single buffered']
    #allocation4 [shape = 's32[1]{0}', space=sflag, size = 0x4, scoped, tag = 'scoped memory for tpu_custom_call.1']
    #allocation5 [shape = 's32[1]{0}', space=sflag, size = 0x4, scoped, tag = 'scoped memory for tpu_custom_call.1']
    #allocation6 [shape = 'u8[131072]{0}', space=vmem, size = 0x20000, scoped, tag = 'input window, operand 7, single buffered']
    #allocation7 [shape = 's32[1]{0}', space=sflag, size = 0x4, scoped, tag = 'scoped memory for tpu_custom_call.1']
    #allocation8 [shape = 'u8[16384]{0}', space=vmem, size = 0x4000, scoped, tag = 'output window, operand 0, single buffered']
    %16 = vsyncpa [#allocation4], 0
    %17 = vsyncpa [#allocation7], 0
    %18 = vsyncpa [#allocation5], 0
    // Predicated region
    $region2: #{tpu_custom_call.1} parent=1 // pred_check
      _
    $region3: #{tpu_custom_call.1} parent=1 // pred_check_branch
      %20 = sbr.rel (0) target = $region5
    $region4: #{tpu_custom_call.1} parent=1 // pred_region
      _
    $region5: #{tpu_custom_call.1} parent=1 // pred_fallthru
      _
    // Predicated region
    $region6: #{tpu_custom_call.1} parent=1 // pred_check
      _
    $region7: #{tpu_custom_call.1} parent=1 // pred_check_branch
      %22 = sbr.rel (0) target = $region9
    $region8: #{tpu_custom_call.1} parent=1 // pred_region
      _
    $region9: #{tpu_custom_call.1} parent=1 // pred_fallthru
      _
    // Predicated region
    $region10: #{tpu_custom_call.1} parent=1 // pred_check
      _
    $region11: #{tpu_custom_call.1} parent=1 // pred_check_branch
      %24 = sbr.rel (0) target = $region13
    $region12: #{tpu_custom_call.1} parent=1 // pred_region
      _
    $region13: #{tpu_custom_call.1} parent=1 // pred_fallthru
      _
    // Predicated region
    $region14: #{tpu_custom_call.1} parent=1 // pred_check
      _
    $region15: #{tpu_custom_call.1} parent=1 // pred_check_branch
      %26 = sbr.rel (0) target = $region17
    $region16: #{tpu_custom_call.1} parent=1 // pred_region
      %28 = vsyncadd [#allocation4], 0
      %s29 = sshll.u32 %s3, 4
      %s30 = int_to_ptr.hbm [resolvable:$true] %s29
      %s31 = sshll.u32 [#allocation3], 4
      %s32 = int_to_ptr.vmem [resolvable:$true] %s31
      %37 = dma.hbm_to_vmem [thread:$0]  %s30, 512, %s32, [#allocation4], 128, 128, 8
    $region17: #{tpu_custom_call.1} parent=1 // pred_fallthru
      _
    // Predicated region
    $region18: #{tpu_custom_call.1} parent=1 // pred_check
      _
    $region19: #{tpu_custom_call.1} parent=1 // pred_check_branch
      %39 = sbr.rel (0) target = $region21
    $region20: #{tpu_custom_call.1} parent=1 // pred_region
      _
    $region21: #{tpu_custom_call.1} parent=1 // pred_fallthru
      _
    // Predicated region
    $region22: #{tpu_custom_call.1} parent=1 // pred_check
      _
    $region23: #{tpu_custom_call.1} parent=1 // pred_check_branch
      %41 = sbr.rel (0) target = $region25
    $region24: #{tpu_custom_call.1} parent=1 // pred_region
      _
    $region25: #{tpu_custom_call.1} parent=1 // pred_fallthru
      _
    // Predicated region
    $region26: #{tpu_custom_call.1} parent=1 // pred_check
      _
    $region27: #{tpu_custom_call.1} parent=1 // pred_check_branch
      %43 = sbr.rel (0) target = $region29
    $region28: #{tpu_custom_call.1} parent=1 // pred_region
      _
    $region29: #{tpu_custom_call.1} parent=1 // pred_fallthru
      _
    // Predicated region
    $region30: #{tpu_custom_call.1} parent=1 // pred_check
      _
    $region31: #{tpu_custom_call.1} parent=1 // pred_check_branch
      %45 = sbr.rel (0) target = $region33
    $region32: #{tpu_custom_call.1} parent=1 // pred_region
      %47 = vsyncadd [#allocation7], 0
      %s48 = sshll.u32 %s7, 4
      %s49 = int_to_ptr.hbm [resolvable:$true] %s48
      %s50 = sshll.u32 [#allocation6], 4
      %s51 = int_to_ptr.vmem [resolvable:$true] %s50
      %56 = dma.hbm_to_vmem [thread:$0]  %s49, 4096, %s51, [#allocation7], 512, 512, 32
    $region33: #{tpu_custom_call.1} parent=1 // pred_fallthru
      _
    // Predicated region
    $region34: #{tpu_custom_call.1} parent=1 // pred_check
      _
    $region35: #{tpu_custom_call.1} parent=1 // pred_check_branch
      %58 = sbr.rel (0) target = $region37
    $region36: #{tpu_custom_call.1} parent=1 // pred_region
      _
    $region37: #{tpu_custom_call.1} parent=1 // pred_fallthru
      _
    // Predicated region
    $region38: #{tpu_custom_call.1} parent=1 // pred_check
      _
    $region39: #{tpu_custom_call.1} parent=1 // pred_check_branch
      %60 = sbr.rel (0) target = $region41
    $region40: #{tpu_custom_call.1} parent=1 // pred_region
      _
    $region41: #{tpu_custom_call.1} parent=1 // pred_fallthru
      _
    // Predicated region
    $region42: #{tpu_custom_call.1} parent=1 // pred_check
      _
    $region43: #{tpu_custom_call.1} parent=1 // pred_check_branch
      %62 = sbr.rel (0) target = $region45
    $region44: #{tpu_custom_call.1} parent=1 // pred_region
      %64 = dma.done [#allocation4], 512
    $region45: #{tpu_custom_call.1} parent=1 // pred_fallthru
      _
    // Predicated region
    $region46: #{tpu_custom_call.1} parent=1 // pred_check
      _
    $region47: #{tpu_custom_call.1} parent=1 // pred_check_branch
      %66 = sbr.rel (0) target = $region49
    $region48: #{tpu_custom_call.1} parent=1 // pred_region
      %68 = dma.done [#allocation7], 4096
    $region49: #{tpu_custom_call.1} parent=1 // pred_fallthru
      _
    %v69 = vld [vmem:[%s0] sm:$0xff]
    %v70 = vld [vmem:[%s0 + $0x8] sm:$0xff]
    %v71 = vld [vmem:[%s0 + $0x10] sm:$0xff]
    %v72 = vld [vmem:[%s0 + $0x18] sm:$0xff]
    %v73 = vmul.f32 %v69, %v69
    %v74 = vmul.f32 %v70, %v70
    %v75 = vmul.f32 %v71, %v71
    %v76 = vmul.f32 %v72, %v72
    %vm77 = vcmask 523264
    %v78 = vsel %vm77, %v73, 0.0
    %79 = vadd.xlane.f32.xlu0 %v78
    %v80 = vpop.xlane.xlu0 %79
    %v81 = vsel %vm77, %v74, 0.0
    %82 = vadd.xlane.f32.xlu0 %v81
    %v83 = vpop.xlane.xlu0 %82
    %v84 = vsel %vm77, %v75, 0.0
    %85 = vadd.xlane.f32.xlu0 %v84
    %v86 = vpop.xlane.xlu0 %85
    %v87 = vsel %vm77, %v76, 0.0
    %88 = vadd.xlane.f32.xlu0 %v87
    %v89 = vpop.xlane.xlu0 %88
    %v90 = vrcp.pop 64.0
    %v91 = vmul.f32 64.0, %v90
    %v92 = vsub.f32 1.0, %v91
    %v93 = vmul.f32 %v90, %v92
    %v94 = vadd.f32 %v90, %v93
    %vm95 = vweird.f32 %v90
    %v96 = vsel %vm95, %v90, %v94
    %v97 = vmul.f32 %v80, %v96
    %v98 = vmul.f32 %v83, %v96
    %v99 = vmul.f32 %v86, %v96
    %v100 = vmul.f32 %v89, %v96
    %v101 = vrsqrt.pop %v97
    %v102 = vmul.f32 %v101, %v97
    %v103 = vmul.f32 %v102, %v101
    %v104 = vmul.f32 0.5, %v103
    %v105 = vsub.f32 1.5, %v104
    %v106 = vmul.f32 %v101, %v105
    %v107 = vmul.f32 %v97, %v106
    %vm108 = vcmp.eq.f32.partialorder %v97, inf
    %v109 = vsel %vm108, %v97, %v107
    %vm110 = vcmp.eq.f32.partialorder %v97, 0.0
    %v111 = vand.u32 %v97, 2147483648
    %v112 = vsel %vm110, %v111, %v109
    %v113 = vrsqrt.pop %v98
    %v114 = vmul.f32 %v113, %v98
    %v115 = vmul.f32 %v114, %v113
    %v116 = vmul.f32 0.5, %v115
    %v117 = vsub.f32 1.5, %v116
    %v118 = vmul.f32 %v113, %v117
    %v119 = vmul.f32 %v98, %v118
    %vm120 = vcmp.eq.f32.partialorder %v98, inf
    %v121 = vsel %vm120, %v98, %v119
    %vm122 = vcmp.eq.f32.partialorder %v98, 0.0
    %v123 = vand.u32 %v98, 2147483648
    %v124 = vsel %vm122, %v123, %v121
    %v125 = vrsqrt.pop %v99
    %v126 = vmul.f32 %v125, %v99
    %v127 = vmul.f32 %v126, %v125
    %v128 = vmul.f32 0.5, %v127
    %v129 = vsub.f32 1.5, %v128
    %v130 = vmul.f32 %v125, %v129
    %v131 = vmul.f32 %v99, %v130
    %vm132 = vcmp.eq.f32.partialorder %v99, inf
    %v133 = vsel %vm132, %v99, %v131
    %vm134 = vcmp.eq.f32.partialorder %v99, 0.0
    %v135 = vand.u32 %v99, 2147483648
    %v136 = vsel %vm134, %v135, %v133
    %v137 = vrsqrt.pop %v100
    %v138 = vmul.f32 %v137, %v100
    %v139 = vmul.f32 %v138, %v137
    %v140 = vmul.f32 0.5, %v139
    %v141 = vsub.f32 1.5, %v140
    %v142 = vmul.f32 %v137, %v141
    %v143 = vmul.f32 %v100, %v142
    %vm144 = vcmp.eq.f32.partialorder %v100, inf
    %v145 = vsel %vm144, %v100, %v143
    %vm146 = vcmp.eq.f32.partialorder %v100, 0.0
    %v147 = vand.u32 %v100, 2147483648
    %v148 = vsel %vm146, %v147, %v145
    %v149 = vadd.f32 %v112, 1e-08
    %v150 = vadd.f32 %v124, 1e-08
    %v151 = vadd.f32 %v136, 1e-08
    %v152 = vadd.f32 %v148, 1e-08
    %v153 = vrcp.pop %v149
    %v154 = vrcp.pop %v150
    %v155 = vrcp.pop %v151
    %v156 = vrcp.pop %v152
    %v157 = vmul.f32 %v69, %v153
    %v158 = vmul.f32 %v70, %v154
    %v159 = vmul.f32 %v71, %v155
    %v160 = vmul.f32 %v72, %v156
    %v161 = vld [vmem:[%s1] sm:$0xff]
    %v162 = vld [vmem:[%s1 + $0x8] sm:$0xff]
    %v163 = vld [vmem:[%s1 + $0x10] sm:$0xff]
    %v164 = vld [vmem:[%s1 + $0x18] sm:$0xff]
    %v165 = vld [vmem:[%s1 + $0x20] sm:$0xff]
    %v166 = vld [vmem:[%s1 + $0x28] sm:$0xff]
    %v167 = vld [vmem:[%s1 + $0x30] sm:$0xff]
    %v168 = vld [vmem:[%s1 + $0x38] sm:$0xff]
    %v169 = vld [vmem:[%s1 + $0x40] sm:$0xff]
    %v170 = vld [vmem:[%s1 + $0x48] sm:$0xff]
    %v171 = vld [vmem:[%s1 + $0x50] sm:$0xff]
    %v172 = vld [vmem:[%s1 + $0x58] sm:$0xff]
    %v173 = vld [vmem:[%s1 + $0x60] sm:$0xff]
    %v174 = vld [vmem:[%s1 + $0x68] sm:$0xff]
    %v175 = vld [vmem:[%s1 + $0x70] sm:$0xff]
    %v176 = vld [vmem:[%s1 + $0x78] sm:$0xff]
    %v177 = vld [vmem:[%s1 + $0x80] sm:$0xff]
    %v178 = vld [vmem:[%s1 + $0x88] sm:$0xff]
    %v179 = vld [vmem:[%s1 + $0x90] sm:$0xff]
    %v180 = vld [vmem:[%s1 + $0x98] sm:$0xff]
    %v181 = vld [vmem:[%s1 + $0xa0] sm:$0xff]
    %v182 = vld [vmem:[%s1 + $0xa8] sm:$0xff]
    %v183 = vld [vmem:[%s1 + $0xb0] sm:$0xff]
    %v184 = vld [vmem:[%s1 + $0xb8] sm:$0xff]
    %v185 = vld [vmem:[%s1 + $0xc0] sm:$0xff]
    %v186 = vld [vmem:[%s1 + $0xc8] sm:$0xff]
    %v187 = vld [vmem:[%s1 + $0xd0] sm:$0xff]
    %v188 = vld [vmem:[%s1 + $0xd8] sm:$0xff]
    %v189 = vld [vmem:[%s1 + $0xe0] sm:$0xff]
    %v190 = vld [vmem:[%s1 + $0xe8] sm:$0xff]
    %v191 = vld [vmem:[%s1 + $0xf0] sm:$0xff]
    %v192 = vld [vmem:[%s1 + $0xf8] sm:$0xff]
    %v194 = vsel %vm77, %v157, 0
    %v197 = vsel %vm77, %v158, 0
    %v200 = vsel %vm77, %v159, 0
    %v203 = vsel %vm77, %v160, 0
    %205 = vmatpush.msra.mxu0 0.0
    %206 = vmatpush.msra.mxu0 0.0
    %207 = vmatpush.msra.mxu0 0.0
    %208 = vmatpush.msra.mxu0 0.0
    %209 = vmatpush.msra.mxu0 0.0
    %210 = vmatpush.msra.mxu0 0.0
    %211 = vmatpush.msra.mxu0 0.0
    %212 = vmatpush.msra.mxu0 0.0
    %213 = vmatpush.msra.mxu0 %v189
    %214 = vmatpush.msra.mxu0 %v185
    %215 = vmatpush.msra.mxu0 %v181
    %216 = vmatpush.msra.mxu0 %v177
    %217 = vmatpush.msra.mxu0 %v173
    %218 = vmatpush.msra.mxu0 %v169
    %219 = vmatpush.msra.mxu0 %v165
    %220 = vmatpush.msra.mxu0 %v161
    %221 = vmatmul.f32.gmra.mxu0 %v194
    %v222 = vpop.f32.mrf.mxu0
    %v223 = vadd.f32 0.0, %v222
    %224 = vmatmul.f32.gmra.mxu0 %v197
    %v225 = vpop.f32.mrf.mxu0
    %v226 = vadd.f32 0.0, %v225
    %227 = vmatmul.f32.gmra.mxu0 %v200
    %v228 = vpop.f32.mrf.mxu0
    %v229 = vadd.f32 0.0, %v228
    %230 = vmatmul.f32.gmra.mxu0 %v203
    %v231 = vpop.f32.mrf.mxu0
    %v232 = vadd.f32 0.0, %v231
    %233 = vdwg.mxu0
    %234 = vmatpush.msra.mxu0 0.0
    %235 = vmatpush.msra.mxu0 0.0
    %236 = vmatpush.msra.mxu0 0.0
    %237 = vmatpush.msra.mxu0 0.0
    %238 = vmatpush.msra.mxu0 0.0
    %239 = vmatpush.msra.mxu0 0.0
    %240 = vmatpush.msra.mxu0 0.0
    %241 = vmatpush.msra.mxu0 0.0
    %242 = vmatpush.msra.mxu0 %v190
    %243 = vmatpush.msra.mxu0 %v186
    %244 = vmatpush.msra.mxu0 %v182
    %245 = vmatpush.msra.mxu0 %v178
    %246 = vmatpush.msra.mxu0 %v174
    %247 = vmatpush.msra.mxu0 %v170
    %248 = vmatpush.msra.mxu0 %v166
    %249 = vmatpush.msra.mxu0 %v162
    %250 = vmatmul.f32.gmra.mxu0 %v194
    %v251 = vpop.f32.mrf.mxu0
    %v252 = vadd.f32 0.0, %v251
    %253 = vmatmul.f32.gmra.mxu0 %v197
    %v254 = vpop.f32.mrf.mxu0
    %v255 = vadd.f32 0.0, %v254
    %256 = vmatmul.f32.gmra.mxu0 %v200
    %v257 = vpop.f32.mrf.mxu0
    %v258 = vadd.f32 0.0, %v257
    %259 = vmatmul.f32.gmra.mxu0 %v203
    %v260 = vpop.f32.mrf.mxu0
    %v261 = vadd.f32 0.0, %v260
    %262 = vdwg.mxu0
    %263 = vmatpush.msra.mxu0 0.0
    %264 = vmatpush.msra.mxu0 0.0
    %265 = vmatpush.msra.mxu0 0.0
    %266 = vmatpush.msra.mxu0 0.0
    %267 = vmatpush.msra.mxu0 0.0
    %268 = vmatpush.msra.mxu0 0.0
    %269 = vmatpush.msra.mxu0 0.0
    %270 = vmatpush.msra.mxu0 0.0
    %271 = vmatpush.msra.mxu0 %v191
    %272 = vmatpush.msra.mxu0 %v187
    %273 = vmatpush.msra.mxu0 %v183
    %274 = vmatpush.msra.mxu0 %v179
    %275 = vmatpush.msra.mxu0 %v175
    %276 = vmatpush.msra.mxu0 %v171
    %277 = vmatpush.msra.mxu0 %v167
    %278 = vmatpush.msra.mxu0 %v163
    %279 = vmatmul.f32.gmra.mxu0 %v194
    %v280 = vpop.f32.mrf.mxu0
    %v281 = vadd.f32 0.0, %v280
    %282 = vmatmul.f32.gmra.mxu0 %v197
    %v283 = vpop.f32.mrf.mxu0
    %v284 = vadd.f32 0.0, %v283
    %285 = vmatmul.f32.gmra.mxu0 %v200
    %v286 = vpop.f32.mrf.mxu0
    %v287 = vadd.f32 0.0, %v286
    %288 = vmatmul.f32.gmra.mxu0 %v203
    %v289 = vpop.f32.mrf.mxu0
    %v290 = vadd.f32 0.0, %v289
    %291 = vdwg.mxu0
    %292 = vmatpush.msra.mxu0 0.0
    %293 = vmatpush.msra.mxu0 0.0
    %294 = vmatpush.msra.mxu0 0.0
    %295 = vmatpush.msra.mxu0 0.0
    %296 = vmatpush.msra.mxu0 0.0
    %297 = vmatpush.msra.mxu0 0.0
    %298 = vmatpush.msra.mxu0 0.0
    %299 = vmatpush.msra.mxu0 0.0
    %300 = vmatpush.msra.mxu0 %v192
    %301 = vmatpush.msra.mxu0 %v188
    %302 = vmatpush.msra.mxu0 %v184
    %303 = vmatpush.msra.mxu0 %v180
    %304 = vmatpush.msra.mxu0 %v176
    %305 = vmatpush.msra.mxu0 %v172
    %306 = vmatpush.msra.mxu0 %v168
    %307 = vmatpush.msra.mxu0 %v164
    %308 = vmatmul.f32.gmra.mxu0 %v194
    %v309 = vpop.f32.mrf.mxu0
    %v310 = vadd.f32 0.0, %v309
    %311 = vmatmul.f32.gmra.mxu0 %v197
    %v312 = vpop.f32.mrf.mxu0
    %v313 = vadd.f32 0.0, %v312
    %314 = vmatmul.f32.gmra.mxu0 %v200
    %v315 = vpop.f32.mrf.mxu0
    %v316 = vadd.f32 0.0, %v315
    %317 = vmatmul.f32.gmra.mxu0 %v203
    %v318 = vpop.f32.mrf.mxu0
    %v319 = vadd.f32 0.0, %v318
    %320 = vdwg.mxu0
    %v321 = vld [vmem:[%s2] sm:$0xff]
    %v322 = vld [vmem:[%s2 + $0x8] sm:$0xff]
    %v323 = vld [vmem:[%s2 + $0x10] sm:$0xff]
    %v324 = vld [vmem:[%s2 + $0x18] sm:$0xff]
    %v325 = vmul.f32 %v223, %v321
    %v326 = vmul.f32 %v226, %v322
    %v327 = vmul.f32 %v229, %v323
    %v328 = vmul.f32 %v232, %v324
    %v329 = vld [vmem:[#allocation3] sm:$0xff]
    %v330 = vld [vmem:[#allocation3 + $0x8] sm:$0xff]
    %v331 = vld [vmem:[#allocation3 + $0x10] sm:$0xff]
    %v332 = vld [vmem:[#allocation3 + $0x18] sm:$0xff]
    %v333 = vmul.f32 %v252, %v329
    %v334 = vmul.f32 %v255, %v330
    %v335 = vmul.f32 %v258, %v331
    %v336 = vmul.f32 %v261, %v332
    %v337 = vadd.f32 %v325, %v333
    %v338 = vadd.f32 %v326, %v334
    %v339 = vadd.f32 %v327, %v335
    %v340 = vadd.f32 %v328, %v336
    %343 = vrot.lane.b32.xlu0 %v337, 120
    %v344 = vpop.permute.xlu0 %343
    %345 = vrot.lane.b32.xlu0 %v338, 120
    %v346 = vpop.permute.xlu0 %345
    %347 = vrot.lane.b32.xlu0 %v337, 112
    %v348 = vpop.permute.xlu0 %347
    %349 = vrot.lane.b32.xlu0 %v338, 112
    %v350 = vpop.permute.xlu0 %349
    %351 = vrot.lane.b32.xlu0 %v337, 104
    %v352 = vpop.permute.xlu0 %351
    %353 = vrot.lane.b32.xlu0 %v338, 104
    %v354 = vpop.permute.xlu0 %353
    %355 = vrot.lane.b32.xlu0 %v337, 96
    %v356 = vpop.permute.xlu0 %355
    %357 = vrot.lane.b32.xlu0 %v338, 96
    %v358 = vpop.permute.xlu0 %357
    %359 = vrot.lane.b32.xlu0 %v337, 88
    %v360 = vpop.permute.xlu0 %359
    %361 = vrot.lane.b32.xlu0 %v338, 88
    %v362 = vpop.permute.xlu0 %361
    %363 = vrot.lane.b32.xlu0 %v337, 80
    %v364 = vpop.permute.xlu0 %363
    %365 = vrot.lane.b32.xlu0 %v338, 80
    %v366 = vpop.permute.xlu0 %365
    %367 = vrot.lane.b32.xlu0 %v337, 72
    %v368 = vpop.permute.xlu0 %367
    %369 = vrot.lane.b32.xlu0 %v338, 72
    %v370 = vpop.permute.xlu0 %369
    %373 = vrot.lane.b32.xlu0 %v339, 120
    %v374 = vpop.permute.xlu0 %373
    %375 = vrot.lane.b32.xlu0 %v340, 120
    %v376 = vpop.permute.xlu0 %375
    %377 = vrot.lane.b32.xlu0 %v339, 112
    %v378 = vpop.permute.xlu0 %377
    %379 = vrot.lane.b32.xlu0 %v340, 112
    %v380 = vpop.permute.xlu0 %379
    %381 = vrot.lane.b32.xlu0 %v339, 104
    %v382 = vpop.permute.xlu0 %381
    %383 = vrot.lane.b32.xlu0 %v340, 104
    %v384 = vpop.permute.xlu0 %383
    %385 = vrot.lane.b32.xlu0 %v339, 96
    %v386 = vpop.permute.xlu0 %385
    %387 = vrot.lane.b32.xlu0 %v340, 96
    %v388 = vpop.permute.xlu0 %387
    %389 = vrot.lane.b32.xlu0 %v339, 88
    %v390 = vpop.permute.xlu0 %389
    %391 = vrot.lane.b32.xlu0 %v340, 88
    %v392 = vpop.permute.xlu0 %391
    %393 = vrot.lane.b32.xlu0 %v339, 80
    %v394 = vpop.permute.xlu0 %393
    %395 = vrot.lane.b32.xlu0 %v340, 80
    %v396 = vpop.permute.xlu0 %395
    %397 = vrot.lane.b32.xlu0 %v339, 72
    %v398 = vpop.permute.xlu0 %397
    %399 = vrot.lane.b32.xlu0 %v340, 72
    %v400 = vpop.permute.xlu0 %399
    %403 = vrot.lane.b32.xlu0 %v281, 64
    %v404 = vpop.permute.xlu0 %403
    %405 = vrot.lane.b32.xlu0 %v284, 64
    %v406 = vpop.permute.xlu0 %405
    %411 = vrot.lane.b32.xlu0 %v310, 64
    %v412 = vpop.permute.xlu0 %411
    %413 = vrot.lane.b32.xlu0 %v313, 64
    %v414 = vpop.permute.xlu0 %413
    %419 = vrot.lane.b32.xlu0 %v287, 64
    %v420 = vpop.permute.xlu0 %419
    %421 = vrot.lane.b32.xlu0 %v290, 64
    %v422 = vpop.permute.xlu0 %421
    %427 = vrot.lane.b32.xlu0 %v316, 64
    %v428 = vpop.permute.xlu0 %427
    %429 = vrot.lane.b32.xlu0 %v319, 64
    %v430 = vpop.permute.xlu0 %429
    %v433 = vld [vmem:[%s4] sm:$0xff]
    %v434 = vld [vmem:[%s4 + $0x8] sm:$0xff]
    %v435 = vld [vmem:[%s4 + $0x10] sm:$0xff]
    %v436 = vld [vmem:[%s4 + $0x18] sm:$0xff]
    %v437 = vld [vmem:[%s4 + $0x20] sm:$0xff]
    %v438 = vld [vmem:[%s4 + $0x28] sm:$0xff]
    %v439 = vld [vmem:[%s4 + $0x30] sm:$0xff]
    %v440 = vld [vmem:[%s4 + $0x38] sm:$0xff]
    %v441 = vld [vmem:[%s4 + $0x40] sm:$0xff]
    %v442 = vld [vmem:[%s4 + $0x48] sm:$0xff]
    %v443 = vld [vmem:[%s4 + $0x50] sm:$0xff]
    %v444 = vld [vmem:[%s4 + $0x58] sm:$0xff]
    %v445 = vld [vmem:[%s4 + $0x60] sm:$0xff]
    %v446 = vld [vmem:[%s4 + $0x68] sm:$0xff]
    %v447 = vld [vmem:[%s4 + $0x70] sm:$0xff]
    %v448 = vld [vmem:[%s4 + $0x78] sm:$0xff]
    %v449 = vld [vmem:[%s4 + $0x80] sm:$0xff]
    %v450 = vld [vmem:[%s4 + $0x88] sm:$0xff]
    %v451 = vld [vmem:[%s4 + $0x90] sm:$0xff]
    %v452 = vld [vmem:[%s4 + $0x98] sm:$0xff]
    %v453 = vld [vmem:[%s4 + $0xa0] sm:$0xff]
    %v454 = vld [vmem:[%s4 + $0xa8] sm:$0xff]
    %v455 = vld [vmem:[%s4 + $0xb0] sm:$0xff]
    %v456 = vld [vmem:[%s4 + $0xb8] sm:$0xff]
    %v457 = vld [vmem:[%s4 + $0xc0] sm:$0xff]
    %v458 = vld [vmem:[%s4 + $0xc8] sm:$0xff]
    %v459 = vld [vmem:[%s4 + $0xd0] sm:$0xff]
    %v460 = vld [vmem:[%s4 + $0xd8] sm:$0xff]
    %v461 = vld [vmem:[%s4 + $0xe0] sm:$0xff]
    %v462 = vld [vmem:[%s4 + $0xe8] sm:$0xff]
    %v463 = vld [vmem:[%s4 + $0xf0] sm:$0xff]
    %v464 = vld [vmem:[%s4 + $0xf8] sm:$0xff]
    %465 = vrot.lane.b32.xlu0 %v337, 64
    %v466 = vpop.permute.xlu0 %465
    %467 = vrot.lane.b32.xlu0 %v338, 64
    %v468 = vpop.permute.xlu0 %467
    %469 = vrot.lane.b32.xlu0 %v344, 64
    %v470 = vpop.permute.xlu0 %469
    %471 = vrot.lane.b32.xlu0 %v346, 64
    %v472 = vpop.permute.xlu0 %471
    %473 = vrot.lane.b32.xlu0 %v348, 64
    %v474 = vpop.permute.xlu0 %473
    %475 = vrot.lane.b32.xlu0 %v350, 64
    %v476 = vpop.permute.xlu0 %475
    %477 = vrot.lane.b32.xlu0 %v352, 64
    %v478 = vpop.permute.xlu0 %477
    %479 = vrot.lane.b32.xlu0 %v354, 64
    %v480 = vpop.permute.xlu0 %479
    %481 = vrot.lane.b32.xlu0 %v339, 64
    %v482 = vpop.permute.xlu0 %481
    %483 = vrot.lane.b32.xlu0 %v340, 64
    %v484 = vpop.permute.xlu0 %483
    %485 = vrot.lane.b32.xlu0 %v374, 64
    %v486 = vpop.permute.xlu0 %485
    %487 = vrot.lane.b32.xlu0 %v376, 64
    %v488 = vpop.permute.xlu0 %487
    %489 = vrot.lane.b32.xlu0 %v378, 64
    %v490 = vpop.permute.xlu0 %489
    %491 = vrot.lane.b32.xlu0 %v380, 64
    %v492 = vpop.permute.xlu0 %491
    %493 = vrot.lane.b32.xlu0 %v382, 64
    %v494 = vpop.permute.xlu0 %493
    %495 = vrot.lane.b32.xlu0 %v384, 64
    %v496 = vpop.permute.xlu0 %495
    %vm497 = vcmask 64512
    %v498 = vsel %vm497, %v337, 0
    %v500 = vsel %vm497, %v338, 0
    %v502 = vsel %vm497, %v344, 0
    %v504 = vsel %vm497, %v346, 0
    %v506 = vsel %vm497, %v348, 0
    %v508 = vsel %vm497, %v350, 0
    %v510 = vsel %vm497, %v352, 0
    %v512 = vsel %vm497, %v354, 0
    %v514 = vsel %vm497, %v356, 0
    %v516 = vsel %vm497, %v358, 0
    %v518 = vsel %vm497, %v360, 0
    %v520 = vsel %vm497, %v362, 0
    %v522 = vsel %vm497, %v364, 0
    %v524 = vsel %vm497, %v366, 0
    %v526 = vsel %vm497, %v368, 0
    %v528 = vsel %vm497, %v370, 0
    %v530 = vsel %vm497, %v339, 0
    %v532 = vsel %vm497, %v340, 0
    %v534 = vsel %vm497, %v374, 0
    %v536 = vsel %vm497, %v376, 0
    %v538 = vsel %vm497, %v378, 0
    %v540 = vsel %vm497, %v380, 0
    %v542 = vsel %vm497, %v382, 0
    %v544 = vsel %vm497, %v384, 0
    %v546 = vsel %vm497, %v386, 0
    %v548 = vsel %vm497, %v388, 0
    %v550 = vsel %vm497, %v390, 0
    %v552 = vsel %vm497, %v392, 0
    %v554 = vsel %vm497, %v394, 0
    %v556 = vsel %vm497, %v396, 0
    %v558 = vsel %vm497, %v398, 0
    %v560 = vsel %vm497, %v400, 0
    %v562 = vsel %vm497, %v466, 0
    %v564 = vsel %vm497, %v468, 0
    %v566 = vsel %vm497, %v470, 0
    %v568 = vsel %vm497, %v472, 0
    %v570 = vsel %vm497, %v474, 0
    %v572 = vsel %vm497, %v476, 0
    %v574 = vsel %vm497, %v478, 0
    %v576 = vsel %vm497, %v480, 0
    %v578 = vsel %vm497, %v482, 0
    %v580 = vsel %vm497, %v484, 0
    %v582 = vsel %vm497, %v486, 0
    %v584 = vsel %vm497, %v488, 0
    %v586 = vsel %vm497, %v490, 0
    %v588 = vsel %vm497, %v492, 0
    %v590 = vsel %vm497, %v494, 0
    %v592 = vsel %vm497, %v496, 0
    %594 = vmatpush.xpose.msra.mxu0 %v592
    %595 = vmatpush.xpose.msra.mxu0 %v590
    %596 = vmatpush.xpose.msra.mxu0 %v588
    %597 = vmatpush.xpose.msra.mxu0 %v586
    %598 = vmatpush.xpose.msra.mxu0 %v584
    %599 = vmatpush.xpose.msra.mxu0 %v582
    %600 = vmatpush.xpose.msra.mxu0 %v580
    %601 = vmatpush.xpose.msra.mxu0 %v578
    %602 = vmatpush.xpose.msra.mxu0 %v576
    %603 = vmatpush.xpose.msra.mxu0 %v574
    %604 = vmatpush.xpose.msra.mxu0 %v572
    %605 = vmatpush.xpose.msra.mxu0 %v570
    %606 = vmatpush.xpose.msra.mxu0 %v568
    %607 = vmatpush.xpose.msra.mxu0 %v566
    %608 = vmatpush.xpose.msra.mxu0 %v564
    %609 = vmatpush.xpose.msra.mxu0 %v562
    %610 = vmatmul.f32.gmra.mxu0 %v498
    %v611 = vpop.f32.mrf.mxu0
    %v612 = vadd.f32 %v433, %v611
    %613 = vmatmul.f32.gmra.mxu0 %v500
    %v614 = vpop.f32.mrf.mxu0
    %v615 = vadd.f32 %v434, %v614
    %616 = vmatmul.f32.gmra.mxu0 %v502
    %v617 = vpop.f32.mrf.mxu0
    %v618 = vadd.f32 %v435, %v617
    %619 = vmatmul.f32.gmra.mxu0 %v504
    %v620 = vpop.f32.mrf.mxu0
    %v621 = vadd.f32 %v436, %v620
    %622 = vmatmul.f32.gmra.mxu0 %v506
    %v623 = vpop.f32.mrf.mxu0
    %v624 = vadd.f32 %v437, %v623
    %625 = vmatmul.f32.gmra.mxu0 %v508
    %v626 = vpop.f32.mrf.mxu0
    %v627 = vadd.f32 %v438, %v626
    %628 = vmatmul.f32.gmra.mxu0 %v510
    %v629 = vpop.f32.mrf.mxu0
    %v630 = vadd.f32 %v439, %v629
    %631 = vmatmul.f32.gmra.mxu0 %v512
    %v632 = vpop.f32.mrf.mxu0
    %v633 = vadd.f32 %v440, %v632
    %634 = vmatmul.f32.gmra.mxu0 %v514
    %v635 = vpop.f32.mrf.mxu0
    %v636 = vadd.f32 %v441, %v635
    %637 = vmatmul.f32.gmra.mxu0 %v516
    %v638 = vpop.f32.mrf.mxu0
    %v639 = vadd.f32 %v442, %v638
    %640 = vmatmul.f32.gmra.mxu0 %v518
    %v641 = vpop.f32.mrf.mxu0
    %v642 = vadd.f32 %v443, %v641
    %643 = vmatmul.f32.gmra.mxu0 %v520
    %v644 = vpop.f32.mrf.mxu0
    %v645 = vadd.f32 %v444, %v644
    %646 = vmatmul.f32.gmra.mxu0 %v522
    %v647 = vpop.f32.mrf.mxu0
    %v648 = vadd.f32 %v445, %v647
    %649 = vmatmul.f32.gmra.mxu0 %v524
    %v650 = vpop.f32.mrf.mxu0
    %v651 = vadd.f32 %v446, %v650
    %652 = vmatmul.f32.gmra.mxu0 %v526
    %v653 = vpop.f32.mrf.mxu0
    %v654 = vadd.f32 %v447, %v653
    %655 = vmatmul.f32.gmra.mxu0 %v528
    %v656 = vpop.f32.mrf.mxu0
    %v657 = vadd.f32 %v448, %v656
    %658 = vmatmul.f32.gmra.mxu0 %v530
    %v659 = vpop.f32.mrf.mxu0
    %v660 = vadd.f32 %v449, %v659
    %661 = vmatmul.f32.gmra.mxu0 %v532
    %v662 = vpop.f32.mrf.mxu0
    %v663 = vadd.f32 %v450, %v662
    %664 = vmatmul.f32.gmra.mxu0 %v534
    %v665 = vpop.f32.mrf.mxu0
    %v666 = vadd.f32 %v451, %v665
    %667 = vmatmul.f32.gmra.mxu0 %v536
    %v668 = vpop.f32.mrf.mxu0
    %v669 = vadd.f32 %v452, %v668
    %670 = vmatmul.f32.gmra.mxu0 %v538
    %v671 = vpop.f32.mrf.mxu0
    %v672 = vadd.f32 %v453, %v671
    %673 = vmatmul.f32.gmra.mxu0 %v540
    %v674 = vpop.f32.mrf.mxu0
    %v675 = vadd.f32 %v454, %v674
    %676 = vmatmul.f32.gmra.mxu0 %v542
    %v677 = vpop.f32.mrf.mxu0
    %v678 = vadd.f32 %v455, %v677
    %679 = vmatmul.f32.gmra.mxu0 %v544
    %v680 = vpop.f32.mrf.mxu0
    %v681 = vadd.f32 %v456, %v680
    %682 = vmatmul.f32.gmra.mxu0 %v546
    %v683 = vpop.f32.mrf.mxu0
    %v684 = vadd.f32 %v457, %v683
    %685 = vmatmul.f32.gmra.mxu0 %v548
    %v686 = vpop.f32.mrf.mxu0
    %v687 = vadd.f32 %v458, %v686
    %688 = vmatmul.f32.gmra.mxu0 %v550
    %v689 = vpop.f32.mrf.mxu0
    %v690 = vadd.f32 %v459, %v689
    %691 = vmatmul.f32.gmra.mxu0 %v552
    %v692 = vpop.f32.mrf.mxu0
    %v693 = vadd.f32 %v460, %v692
    %694 = vmatmul.f32.gmra.mxu0 %v554
    %v695 = vpop.f32.mrf.mxu0
    %v696 = vadd.f32 %v461, %v695
    %697 = vmatmul.f32.gmra.mxu0 %v556
    %v698 = vpop.f32.mrf.mxu0
    %v699 = vadd.f32 %v462, %v698
    %700 = vmatmul.f32.gmra.mxu0 %v558
    %v701 = vpop.f32.mrf.mxu0
    %v702 = vadd.f32 %v463, %v701
    %703 = vmatmul.f32.gmra.mxu0 %v560
    %v704 = vpop.f32.mrf.mxu0
    %v705 = vadd.f32 %v464, %v704
    %706 = vdwg.mxu0
    %707 = vmax.xlane.f32.xlu0 %v612
    %v708 = vpop.xlane.xlu0 %707
    %709 = vmax.xlane.f32.xlu0 %v615
    %v710 = vpop.xlane.xlu0 %709
    %711 = vmax.xlane.f32.xlu0 %v618
    %v712 = vpop.xlane.xlu0 %711
    %713 = vmax.xlane.f32.xlu0 %v621
    %v714 = vpop.xlane.xlu0 %713
    %715 = vmax.xlane.f32.xlu0 %v624
    %v716 = vpop.xlane.xlu0 %715
    %717 = vmax.xlane.f32.xlu0 %v627
    %v718 = vpop.xlane.xlu0 %717
    %719 = vmax.xlane.f32.xlu0 %v630
    %v720 = vpop.xlane.xlu0 %719
    %721 = vmax.xlane.f32.xlu0 %v633
    %v722 = vpop.xlane.xlu0 %721
    %723 = vmax.xlane.f32.xlu0 %v636
    %v724 = vpop.xlane.xlu0 %723
    %725 = vmax.xlane.f32.xlu0 %v639
    %v726 = vpop.xlane.xlu0 %725
    %727 = vmax.xlane.f32.xlu0 %v642
    %v728 = vpop.xlane.xlu0 %727
    %729 = vmax.xlane.f32.xlu0 %v645
    %v730 = vpop.xlane.xlu0 %729
    %731 = vmax.xlane.f32.xlu0 %v648
    %v732 = vpop.xlane.xlu0 %731
    %733 = vmax.xlane.f32.xlu0 %v651
    %v734 = vpop.xlane.xlu0 %733
    %735 = vmax.xlane.f32.xlu0 %v654
    %v736 = vpop.xlane.xlu0 %735
    %737 = vmax.xlane.f32.xlu0 %v657
    %v738 = vpop.xlane.xlu0 %737
    %739 = vmax.xlane.f32.xlu0 %v660
    %v740 = vpop.xlane.xlu0 %739
    %741 = vmax.xlane.f32.xlu0 %v663
    %v742 = vpop.xlane.xlu0 %741
    %743 = vmax.xlane.f32.xlu0 %v666
    %v744 = vpop.xlane.xlu0 %743
    %745 = vmax.xlane.f32.xlu0 %v669
    %v746 = vpop.xlane.xlu0 %745
    %747 = vmax.xlane.f32.xlu0 %v672
    %v748 = vpop.xlane.xlu0 %747
    %749 = vmax.xlane.f32.xlu0 %v675
    %v750 = vpop.xlane.xlu0 %749
    %751 = vmax.xlane.f32.xlu0 %v678
    %v752 = vpop.xlane.xlu0 %751
    %753 = vmax.xlane.f32.xlu0 %v681
    %v754 = vpop.xlane.xlu0 %753
    %755 = vmax.xlane.f32.xlu0 %v684
    %v756 = vpop.xlane.xlu0 %755
    %757 = vmax.xlane.f32.xlu0 %v687
    %v758 = vpop.xlane.xlu0 %757
    %759 = vmax.xlane.f32.xlu0 %v690
    %v760 = vpop.xlane.xlu0 %759
    %761 = vmax.xlane.f32.xlu0 %v693
    %v762 = vpop.xlane.xlu0 %761
    %763 = vmax.xlane.f32.xlu0 %v696
    %v764 = vpop.xlane.xlu0 %763
    %765 = vmax.xlane.f32.xlu0 %v699
    %v766 = vpop.xlane.xlu0 %765
    %767 = vmax.xlane.f32.xlu0 %v702
    %v768 = vpop.xlane.xlu0 %767
    %769 = vmax.xlane.f32.xlu0 %v705
    %v770 = vpop.xlane.xlu0 %769
    %v771 = vsub.f32 %v612, %v708
    %v772 = vsub.f32 %v615, %v710
    %v773 = vsub.f32 %v618, %v712
    %v774 = vsub.f32 %v621, %v714
    %v775 = vsub.f32 %v624, %v716
    %v776 = vsub.f32 %v627, %v718
    %v777 = vsub.f32 %v630, %v720
    %v778 = vsub.f32 %v633, %v722
    %v779 = vsub.f32 %v636, %v724
    %v780 = vsub.f32 %v639, %v726
    %v781 = vsub.f32 %v642, %v728
    %v782 = vsub.f32 %v645, %v730
    %v783 = vsub.f32 %v648, %v732
    %v784 = vsub.f32 %v651, %v734
    %v785 = vsub.f32 %v654, %v736
    %v786 = vsub.f32 %v657, %v738
    %v787 = vsub.f32 %v660, %v740
    %v788 = vsub.f32 %v663, %v742
    %v789 = vsub.f32 %v666, %v744
    %v790 = vsub.f32 %v669, %v746
    %v791 = vsub.f32 %v672, %v748
    %v792 = vsub.f32 %v675, %v750
    %v793 = vsub.f32 %v678, %v752
    %v794 = vsub.f32 %v681, %v754
    %v795 = vsub.f32 %v684, %v756
    %v796 = vsub.f32 %v687, %v758
    %v797 = vsub.f32 %v690, %v760
    %v798 = vsub.f32 %v693, %v762
    %v799 = vsub.f32 %v696, %v764
    %v800 = vsub.f32 %v699, %v766
    %v801 = vsub.f32 %v702, %v768
    %v802 = vsub.f32 %v705, %v770
    %v803 = vmul.f32 %v771, 1.442695
    %v804 = vpow.pop %v803
    %v805 = vmul.f32 %v772, 1.442695
    %v806 = vpow.pop %v805
    %v807 = vmul.f32 %v773, 1.442695
    %v808 = vpow.pop %v807
    %v809 = vmul.f32 %v774, 1.442695
    %v810 = vpow.pop %v809
    %v811 = vmul.f32 %v775, 1.442695
    %v812 = vpow.pop %v811
    %v813 = vmul.f32 %v776, 1.442695
    %v814 = vpow.pop %v813
    %v815 = vmul.f32 %v777, 1.442695
    %v816 = vpow.pop %v815
    %v817 = vmul.f32 %v778, 1.442695
    %v818 = vpow.pop %v817
    %v819 = vmul.f32 %v779, 1.442695
    %v820 = vpow.pop %v819
    %v821 = vmul.f32 %v780, 1.442695
    %v822 = vpow.pop %v821
    %v823 = vmul.f32 %v781, 1.442695
    %v824 = vpow.pop %v823
    %v825 = vmul.f32 %v782, 1.442695
    %v826 = vpow.pop %v825
    %v827 = vmul.f32 %v783, 1.442695
    %v828 = vpow.pop %v827
    %v829 = vmul.f32 %v784, 1.442695
    %v830 = vpow.pop %v829
    %v831 = vmul.f32 %v785, 1.442695
    %v832 = vpow.pop %v831
    %v833 = vmul.f32 %v786, 1.442695
    %v834 = vpow.pop %v833
    %v835 = vmul.f32 %v787, 1.442695
    %v836 = vpow.pop %v835
    %v837 = vmul.f32 %v788, 1.442695
    %v838 = vpow.pop %v837
    %v839 = vmul.f32 %v789, 1.442695
    %v840 = vpow.pop %v839
    %v841 = vmul.f32 %v790, 1.442695
    %v842 = vpow.pop %v841
    %v843 = vmul.f32 %v791, 1.442695
    %v844 = vpow.pop %v843
    %v845 = vmul.f32 %v792, 1.442695
    %v846 = vpow.pop %v845
    %v847 = vmul.f32 %v793, 1.442695
    %v848 = vpow.pop %v847
    %v849 = vmul.f32 %v794, 1.442695
    %v850 = vpow.pop %v849
    %v851 = vmul.f32 %v795, 1.442695
    %v852 = vpow.pop %v851
    %v853 = vmul.f32 %v796, 1.442695
    %v854 = vpow.pop %v853
    %v855 = vmul.f32 %v797, 1.442695
    %v856 = vpow.pop %v855
    %v857 = vmul.f32 %v798, 1.442695
    %v858 = vpow.pop %v857
    %v859 = vmul.f32 %v799, 1.442695
    %v860 = vpow.pop %v859
    %v861 = vmul.f32 %v800, 1.442695
    %v862 = vpow.pop %v861
    %v863 = vmul.f32 %v801, 1.442695
    %v864 = vpow.pop %v863
    %v865 = vmul.f32 %v802, 1.442695
    %v866 = vpow.pop %v865
    %867 = vadd.xlane.f32.xlu0 %v804
    %v868 = vpop.xlane.xlu0 %867
    %869 = vadd.xlane.f32.xlu0 %v806
    %v870 = vpop.xlane.xlu0 %869
    %871 = vadd.xlane.f32.xlu0 %v808
    %v872 = vpop.xlane.xlu0 %871
    %873 = vadd.xlane.f32.xlu0 %v810
    %v874 = vpop.xlane.xlu0 %873
    %875 = vadd.xlane.f32.xlu0 %v812
    %v876 = vpop.xlane.xlu0 %875
    %877 = vadd.xlane.f32.xlu0 %v814
    %v878 = vpop.xlane.xlu0 %877
    %879 = vadd.xlane.f32.xlu0 %v816
    %v880 = vpop.xlane.xlu0 %879
    %881 = vadd.xlane.f32.xlu0 %v818
    %v882 = vpop.xlane.xlu0 %881
    %883 = vadd.xlane.f32.xlu0 %v820
    %v884 = vpop.xlane.xlu0 %883
    %885 = vadd.xlane.f32.xlu0 %v822
    %v886 = vpop.xlane.xlu0 %885
    %887 = vadd.xlane.f32.xlu0 %v824
    %v888 = vpop.xlane.xlu0 %887
    %889 = vadd.xlane.f32.xlu0 %v826
    %v890 = vpop.xlane.xlu0 %889
    %891 = vadd.xlane.f32.xlu0 %v828
    %v892 = vpop.xlane.xlu0 %891
    %893 = vadd.xlane.f32.xlu0 %v830
    %v894 = vpop.xlane.xlu0 %893
    %895 = vadd.xlane.f32.xlu0 %v832
    %v896 = vpop.xlane.xlu0 %895
    %897 = vadd.xlane.f32.xlu0 %v834
    %v898 = vpop.xlane.xlu0 %897
    %899 = vadd.xlane.f32.xlu0 %v836
    %v900 = vpop.xlane.xlu0 %899
    %901 = vadd.xlane.f32.xlu0 %v838
    %v902 = vpop.xlane.xlu0 %901
    %903 = vadd.xlane.f32.xlu0 %v840
    %v904 = vpop.xlane.xlu0 %903
    %905 = vadd.xlane.f32.xlu0 %v842
    %v906 = vpop.xlane.xlu0 %905
    %907 = vadd.xlane.f32.xlu0 %v844
    %v908 = vpop.xlane.xlu0 %907
    %909 = vadd.xlane.f32.xlu0 %v846
    %v910 = vpop.xlane.xlu0 %909
    %911 = vadd.xlane.f32.xlu0 %v848
    %v912 = vpop.xlane.xlu0 %911
    %913 = vadd.xlane.f32.xlu0 %v850
    %v914 = vpop.xlane.xlu0 %913
    %915 = vadd.xlane.f32.xlu0 %v852
    %v916 = vpop.xlane.xlu0 %915
    %917 = vadd.xlane.f32.xlu0 %v854
    %v918 = vpop.xlane.xlu0 %917
    %919 = vadd.xlane.f32.xlu0 %v856
    %v920 = vpop.xlane.xlu0 %919
    %921 = vadd.xlane.f32.xlu0 %v858
    %v922 = vpop.xlane.xlu0 %921
    %923 = vadd.xlane.f32.xlu0 %v860
    %v924 = vpop.xlane.xlu0 %923
    %925 = vadd.xlane.f32.xlu0 %v862
    %v926 = vpop.xlane.xlu0 %925
    %927 = vadd.xlane.f32.xlu0 %v864
    %v928 = vpop.xlane.xlu0 %927
    %929 = vadd.xlane.f32.xlu0 %v866
    %v930 = vpop.xlane.xlu0 %929
    %931 = vmatpush.msra.mxu0 %v430
    %932 = vmatpush.msra.mxu0 %v428
    %933 = vmatpush.msra.mxu0 %v319
    %934 = vmatpush.msra.mxu0 %v316
    %935 = vmatpush.msra.mxu0 %v422
    %936 = vmatpush.msra.mxu0 %v420
    %937 = vmatpush.msra.mxu0 %v290
    %938 = vmatpush.msra.mxu0 %v287
    %939 = vmatpush.msra.mxu0 %v414
    %940 = vmatpush.msra.mxu0 %v412
    %941 = vmatpush.msra.mxu0 %v313
    %942 = vmatpush.msra.mxu0 %v310
    %943 = vmatpush.msra.mxu0 %v406
    %944 = vmatpush.msra.mxu0 %v404
    %945 = vmatpush.msra.mxu0 %v284
    %946 = vmatpush.msra.mxu0 %v281
    %947 = vmatmul.f32.gmra.mxu0 %v804
    %v948 = vpop.f32.mrf.mxu0
    %v949 = vadd.f32 0.0, %v948
    %950 = vmatmul.f32.gmra.mxu0 %v806
    %v951 = vpop.f32.mrf.mxu0
    %v952 = vadd.f32 0.0, %v951
    %953 = vmatmul.f32.gmra.mxu0 %v808
    %v954 = vpop.f32.mrf.mxu0
    %v955 = vadd.f32 0.0, %v954
    %956 = vmatmul.f32.gmra.mxu0 %v810
    %v957 = vpop.f32.mrf.mxu0
    %v958 = vadd.f32 0.0, %v957
    %959 = vmatmul.f32.gmra.mxu0 %v812
    %v960 = vpop.f32.mrf.mxu0
    %v961 = vadd.f32 0.0, %v960
    %962 = vmatmul.f32.gmra.mxu0 %v814
    %v963 = vpop.f32.mrf.mxu0
    %v964 = vadd.f32 0.0, %v963
    %965 = vmatmul.f32.gmra.mxu0 %v816
    %v966 = vpop.f32.mrf.mxu0
    %v967 = vadd.f32 0.0, %v966
    %968 = vmatmul.f32.gmra.mxu0 %v818
    %v969 = vpop.f32.mrf.mxu0
    %v970 = vadd.f32 0.0, %v969
    %971 = vmatmul.f32.gmra.mxu0 %v820
    %v972 = vpop.f32.mrf.mxu0
    %v973 = vadd.f32 0.0, %v972
    %974 = vmatmul.f32.gmra.mxu0 %v822
    %v975 = vpop.f32.mrf.mxu0
    %v976 = vadd.f32 0.0, %v975
    %977 = vmatmul.f32.gmra.mxu0 %v824
    %v978 = vpop.f32.mrf.mxu0
    %v979 = vadd.f32 0.0, %v978
    %980 = vmatmul.f32.gmra.mxu0 %v826
    %v981 = vpop.f32.mrf.mxu0
    %v982 = vadd.f32 0.0, %v981
    %983 = vmatmul.f32.gmra.mxu0 %v828
    %v984 = vpop.f32.mrf.mxu0
    %v985 = vadd.f32 0.0, %v984
    %986 = vmatmul.f32.gmra.mxu0 %v830
    %v987 = vpop.f32.mrf.mxu0
    %v988 = vadd.f32 0.0, %v987
    %989 = vmatmul.f32.gmra.mxu0 %v832
    %v990 = vpop.f32.mrf.mxu0
    %v991 = vadd.f32 0.0, %v990
    %992 = vmatmul.f32.gmra.mxu0 %v834
    %v993 = vpop.f32.mrf.mxu0
    %v994 = vadd.f32 0.0, %v993
    %995 = vmatmul.f32.gmra.mxu0 %v836
    %v996 = vpop.f32.mrf.mxu0
    %v997 = vadd.f32 0.0, %v996
    %998 = vmatmul.f32.gmra.mxu0 %v838
    %v999 = vpop.f32.mrf.mxu0
    %v1000 = vadd.f32 0.0, %v999
    %1001 = vmatmul.f32.gmra.mxu0 %v840
    %v1002 = vpop.f32.mrf.mxu0
    %v1003 = vadd.f32 0.0, %v1002
    %1004 = vmatmul.f32.gmra.mxu0 %v842
    %v1005 = vpop.f32.mrf.mxu0
    %v1006 = vadd.f32 0.0, %v1005
    %1007 = vmatmul.f32.gmra.mxu0 %v844
    %v1008 = vpop.f32.mrf.mxu0
    %v1009 = vadd.f32 0.0, %v1008
    %1010 = vmatmul.f32.gmra.mxu0 %v846
    %v1011 = vpop.f32.mrf.mxu0
    %v1012 = vadd.f32 0.0, %v1011
    %1013 = vmatmul.f32.gmra.mxu0 %v848
    %v1014 = vpop.f32.mrf.mxu0
    %v1015 = vadd.f32 0.0, %v1014
    %1016 = vmatmul.f32.gmra.mxu0 %v850
    %v1017 = vpop.f32.mrf.mxu0
    %v1018 = vadd.f32 0.0, %v1017
    %1019 = vmatmul.f32.gmra.mxu0 %v852
    %v1020 = vpop.f32.mrf.mxu0
    %v1021 = vadd.f32 0.0, %v1020
    %1022 = vmatmul.f32.gmra.mxu0 %v854
    %v1023 = vpop.f32.mrf.mxu0
    %v1024 = vadd.f32 0.0, %v1023
    %1025 = vmatmul.f32.gmra.mxu0 %v856
    %v1026 = vpop.f32.mrf.mxu0
    %v1027 = vadd.f32 0.0, %v1026
    %1028 = vmatmul.f32.gmra.mxu0 %v858
    %v1029 = vpop.f32.mrf.mxu0
    %v1030 = vadd.f32 0.0, %v1029
    %1031 = vmatmul.f32.gmra.mxu0 %v860
    %v1032 = vpop.f32.mrf.mxu0
    %v1033 = vadd.f32 0.0, %v1032
    %1034 = vmatmul.f32.gmra.mxu0 %v862
    %v1035 = vpop.f32.mrf.mxu0
    %v1036 = vadd.f32 0.0, %v1035
    %1037 = vmatmul.f32.gmra.mxu0 %v864
    %v1038 = vpop.f32.mrf.mxu0
    %v1039 = vadd.f32 0.0, %v1038
    %1040 = vmatmul.f32.gmra.mxu0 %v866
    %v1041 = vpop.f32.mrf.mxu0
    %v1042 = vadd.f32 0.0, %v1041
    %1043 = vdwg.mxu0
    %v1044 = vrcp.pop %v868
    %v1045 = vrcp.pop %v870
    %v1046 = vrcp.pop %v872
    %v1047 = vrcp.pop %v874
    %v1048 = vrcp.pop %v876
    %v1049 = vrcp.pop %v878
    %v1050 = vrcp.pop %v880
    %v1051 = vrcp.pop %v882
    %v1052 = vrcp.pop %v884
    %v1053 = vrcp.pop %v886
    %v1054 = vrcp.pop %v888
    %v1055 = vrcp.pop %v890
    %v1056 = vrcp.pop %v892
    %v1057 = vrcp.pop %v894
    %v1058 = vrcp.pop %v896
    %v1059 = vrcp.pop %v898
    %v1060 = vrcp.pop %v900
    %v1061 = vrcp.pop %v902
    %v1062 = vrcp.pop %v904
    %v1063 = vrcp.pop %v906
    %v1064 = vrcp.pop %v908
    %v1065 = vrcp.pop %v910
    %v1066 = vrcp.pop %v912
    %v1067 = vrcp.pop %v914
    %v1068 = vrcp.pop %v916
    %v1069 = vrcp.pop %v918
    %v1070 = vrcp.pop %v920
    %v1071 = vrcp.pop %v922
    %v1072 = vrcp.pop %v924
    %v1073 = vrcp.pop %v926
    %v1074 = vrcp.pop %v928
    %v1075 = vrcp.pop %v930
    %v1076 = vmul.f32 %v949, %v1044
    %v1077 = vmul.f32 %v952, %v1045
    %v1078 = vmul.f32 %v955, %v1046
    %v1079 = vmul.f32 %v958, %v1047
    %v1080 = vmul.f32 %v961, %v1048
    %v1081 = vmul.f32 %v964, %v1049
    %v1082 = vmul.f32 %v967, %v1050
    %v1083 = vmul.f32 %v970, %v1051
    %v1084 = vmul.f32 %v973, %v1052
    %v1085 = vmul.f32 %v976, %v1053
    %v1086 = vmul.f32 %v979, %v1054
    %v1087 = vmul.f32 %v982, %v1055
    %v1088 = vmul.f32 %v985, %v1056
    %v1089 = vmul.f32 %v988, %v1057
    %v1090 = vmul.f32 %v991, %v1058
    %v1091 = vmul.f32 %v994, %v1059
    %v1092 = vmul.f32 %v997, %v1060
    %v1093 = vmul.f32 %v1000, %v1061
    %v1094 = vmul.f32 %v1003, %v1062
    %v1095 = vmul.f32 %v1006, %v1063
    %v1096 = vmul.f32 %v1009, %v1064
    %v1097 = vmul.f32 %v1012, %v1065
    %v1098 = vmul.f32 %v1015, %v1066
    %v1099 = vmul.f32 %v1018, %v1067
    %v1100 = vmul.f32 %v1021, %v1068
    %v1101 = vmul.f32 %v1024, %v1069
    %v1102 = vmul.f32 %v1027, %v1070
    %v1103 = vmul.f32 %v1030, %v1071
    %v1104 = vmul.f32 %v1033, %v1072
    %v1105 = vmul.f32 %v1036, %v1073
    %v1106 = vmul.f32 %v1039, %v1074
    %v1107 = vmul.f32 %v1042, %v1075
    %v1108 = vld [vmem:[%s5] sm:$0xff]
    %v1109 = vld [vmem:[%s5 + $0x8] sm:$0xff]
    %v1110 = vld [vmem:[%s5 + $0x10] sm:$0xff]
    %v1111 = vld [vmem:[%s5 + $0x18] sm:$0xff]
    %v1112 = vld [vmem:[%s5 + $0x20] sm:$0xff]
    %v1113 = vld [vmem:[%s5 + $0x28] sm:$0xff]
    %v1114 = vld [vmem:[%s5 + $0x30] sm:$0xff]
    %v1115 = vld [vmem:[%s5 + $0x38] sm:$0xff]
    %v1116 = vld [vmem:[%s5 + $0x40] sm:$0xff]
    %v1117 = vld [vmem:[%s5 + $0x48] sm:$0xff]
    %v1118 = vld [vmem:[%s5 + $0x50] sm:$0xff]
    %v1119 = vld [vmem:[%s5 + $0x58] sm:$0xff]
    %v1120 = vld [vmem:[%s5 + $0x60] sm:$0xff]
    %v1121 = vld [vmem:[%s5 + $0x68] sm:$0xff]
    %v1122 = vld [vmem:[%s5 + $0x70] sm:$0xff]
    %v1123 = vld [vmem:[%s5 + $0x78] sm:$0xff]
    %v1124 = vld [vmem:[%s5 + $0x80] sm:$0xff]
    %v1125 = vld [vmem:[%s5 + $0x88] sm:$0xff]
    %v1126 = vld [vmem:[%s5 + $0x90] sm:$0xff]
    %v1127 = vld [vmem:[%s5 + $0x98] sm:$0xff]
    %v1128 = vld [vmem:[%s5 + $0xa0] sm:$0xff]
    %v1129 = vld [vmem:[%s5 + $0xa8] sm:$0xff]
    %v1130 = vld [vmem:[%s5 + $0xb0] sm:$0xff]
    %v1131 = vld [vmem:[%s5 + $0xb8] sm:$0xff]
    %v1132 = vld [vmem:[%s5 + $0xc0] sm:$0xff]
    %v1133 = vld [vmem:[%s5 + $0xc8] sm:$0xff]
    %v1134 = vld [vmem:[%s5 + $0xd0] sm:$0xff]
    %v1135 = vld [vmem:[%s5 + $0xd8] sm:$0xff]
    %v1136 = vld [vmem:[%s5 + $0xe0] sm:$0xff]
    %v1137 = vld [vmem:[%s5 + $0xe8] sm:$0xff]
    %v1138 = vld [vmem:[%s5 + $0xf0] sm:$0xff]
    %v1139 = vld [vmem:[%s5 + $0xf8] sm:$0xff]
    %v1140 = vmul.f32 %v1076, %v1108
    %v1141 = vmul.f32 %v1077, %v1109
    %v1142 = vmul.f32 %v1078, %v1110
    %v1143 = vmul.f32 %v1079, %v1111
    %v1144 = vmul.f32 %v1080, %v1112
    %v1145 = vmul.f32 %v1081, %v1113
    %v1146 = vmul.f32 %v1082, %v1114
    %v1147 = vmul.f32 %v1083, %v1115
    %v1148 = vmul.f32 %v1084, %v1116
    %v1149 = vmul.f32 %v1085, %v1117
    %v1150 = vmul.f32 %v1086, %v1118
    %v1151 = vmul.f32 %v1087, %v1119
    %v1152 = vmul.f32 %v1088, %v1120
    %v1153 = vmul.f32 %v1089, %v1121
    %v1154 = vmul.f32 %v1090, %v1122
    %v1155 = vmul.f32 %v1091, %v1123
    %v1156 = vmul.f32 %v1092, %v1124
    %v1157 = vmul.f32 %v1093, %v1125
    %v1158 = vmul.f32 %v1094, %v1126
    %v1159 = vmul.f32 %v1095, %v1127
    %v1160 = vmul.f32 %v1096, %v1128
    %v1161 = vmul.f32 %v1097, %v1129
    %v1162 = vmul.f32 %v1098, %v1130
    %v1163 = vmul.f32 %v1099, %v1131
    %v1164 = vmul.f32 %v1100, %v1132
    %v1165 = vmul.f32 %v1101, %v1133
    %v1166 = vmul.f32 %v1102, %v1134
    %v1167 = vmul.f32 %v1103, %v1135
    %v1168 = vmul.f32 %v1104, %v1136
    %v1169 = vmul.f32 %v1105, %v1137
    %v1170 = vmul.f32 %v1106, %v1138
    %v1171 = vmul.f32 %v1107, %v1139
    %v1172 = vld [vmem:[%s6] sm:$0xff]
    %v1173 = vld [vmem:[%s6 + $0x8] sm:$0xff]
    %v1174 = vld [vmem:[%s6 + $0x10] sm:$0xff]
    %v1175 = vld [vmem:[%s6 + $0x18] sm:$0xff]
    %v1176 = vld [vmem:[%s6 + $0x20] sm:$0xff]
    %v1177 = vld [vmem:[%s6 + $0x28] sm:$0xff]
    %v1178 = vld [vmem:[%s6 + $0x30] sm:$0xff]
    %v1179 = vld [vmem:[%s6 + $0x38] sm:$0xff]
    %1180 = vmatpush.msra.mxu0 %v1155
    %1181 = vmatpush.msra.mxu0 %v1154
    %1182 = vmatpush.msra.mxu0 %v1153
    %1183 = vmatpush.msra.mxu0 %v1152
    %1184 = vmatpush.msra.mxu0 %v1151
    %1185 = vmatpush.msra.mxu0 %v1150
    %1186 = vmatpush.msra.mxu0 %v1149
    %1187 = vmatpush.msra.mxu0 %v1148
    %1188 = vmatpush.msra.mxu0 %v1147
    %1189 = vmatpush.msra.mxu0 %v1146
    %1190 = vmatpush.msra.mxu0 %v1145
    %1191 = vmatpush.msra.mxu0 %v1144
    %1192 = vmatpush.msra.mxu0 %v1143
    %1193 = vmatpush.msra.mxu0 %v1142
    %1194 = vmatpush.msra.mxu0 %v1141
    %1195 = vmatpush.msra.mxu0 %v1140
    %1196 = vmatmul.f32.gmra.mxu0 %v1172
    %v1197 = vpop.f32.mrf.mxu0
    %v1198 = vadd.f32 %v69, %v1197
    %1199 = vmatmul.f32.gmra.mxu0 %v1174
    %v1200 = vpop.f32.mrf.mxu0
    %v1201 = vadd.f32 %v70, %v1200
    %1202 = vmatmul.f32.gmra.mxu0 %v1176
    %v1203 = vpop.f32.mrf.mxu0
    %v1204 = vadd.f32 %v71, %v1203
    %1205 = vmatmul.f32.gmra.mxu0 %v1178
    %v1206 = vpop.f32.mrf.mxu0
    %v1207 = vadd.f32 %v72, %v1206
    %1208 = vdwg.mxu0
    %1209 = vmatpush.msra.mxu0 %v1171
    %1210 = vmatpush.msra.mxu0 %v1170
    %1211 = vmatpush.msra.mxu0 %v1169
    %1212 = vmatpush.msra.mxu0 %v1168
    %1213 = vmatpush.msra.mxu0 %v1167
    %1214 = vmatpush.msra.mxu0 %v1166
    %1215 = vmatpush.msra.mxu0 %v1165
    %1216 = vmatpush.msra.mxu0 %v1164
    %1217 = vmatpush.msra.mxu0 %v1163
    %1218 = vmatpush.msra.mxu0 %v1162
    %1219 = vmatpush.msra.mxu0 %v1161
    %1220 = vmatpush.msra.mxu0 %v1160
    %1221 = vmatpush.msra.mxu0 %v1159
    %1222 = vmatpush.msra.mxu0 %v1158
    %1223 = vmatpush.msra.mxu0 %v1157
    %1224 = vmatpush.msra.mxu0 %v1156
    %1225 = vmatmul.f32.gmra.mxu0 %v1173
    %v1226 = vpop.f32.mrf.mxu0
    %v1227 = vadd.f32 %v1198, %v1226
    %1228 = vmatmul.f32.gmra.mxu0 %v1175
    %v1229 = vpop.f32.mrf.mxu0
    %v1230 = vadd.f32 %v1201, %v1229
    %1231 = vmatmul.f32.gmra.mxu0 %v1177
    %v1232 = vpop.f32.mrf.mxu0
    %v1233 = vadd.f32 %v1204, %v1232
    %1234 = vmatmul.f32.gmra.mxu0 %v1179
    %v1235 = vpop.f32.mrf.mxu0
    %v1236 = vadd.f32 %v1207, %v1235
    %1237 = vdwg.mxu0
    %v1238 = vmul.f32 %v1227, %v1227
    %v1239 = vmul.f32 %v1230, %v1230
    %v1240 = vmul.f32 %v1233, %v1233
    %v1241 = vmul.f32 %v1236, %v1236
    %v1242 = vsel %vm77, %v1238, 0.0
    %1243 = vadd.xlane.f32.xlu0 %v1242
    %v1244 = vpop.xlane.xlu0 %1243
    %v1245 = vsel %vm77, %v1239, 0.0
    %1246 = vadd.xlane.f32.xlu0 %v1245
    %v1247 = vpop.xlane.xlu0 %1246
    %v1248 = vsel %vm77, %v1240, 0.0
    %1249 = vadd.xlane.f32.xlu0 %v1248
    %v1250 = vpop.xlane.xlu0 %1249
    %v1251 = vsel %vm77, %v1241, 0.0
    %1252 = vadd.xlane.f32.xlu0 %v1251
    %v1253 = vpop.xlane.xlu0 %1252
    %v1254 = vmul.f32 %v1244, %v96
    %v1255 = vmul.f32 %v1247, %v96
    %v1256 = vmul.f32 %v1250, %v96
    %v1257 = vmul.f32 %v1253, %v96
    %v1258 = vrsqrt.pop %v1254
    %v1259 = vmul.f32 %v1258, %v1254
    %v1260 = vmul.f32 %v1259, %v1258
    %v1261 = vmul.f32 0.5, %v1260
    %v1262 = vsub.f32 1.5, %v1261
    %v1263 = vmul.f32 %v1258, %v1262
    %v1264 = vmul.f32 %v1254, %v1263
    %vm1265 = vcmp.eq.f32.partialorder %v1254, inf
    %v1266 = vsel %vm1265, %v1254, %v1264
    %vm1267 = vcmp.eq.f32.partialorder %v1254, 0.0
    %v1268 = vand.u32 %v1254, 2147483648
    %v1269 = vsel %vm1267, %v1268, %v1266
    %v1270 = vrsqrt.pop %v1255
    %v1271 = vmul.f32 %v1270, %v1255
    %v1272 = vmul.f32 %v1271, %v1270
    %v1273 = vmul.f32 0.5, %v1272
    %v1274 = vsub.f32 1.5, %v1273
    %v1275 = vmul.f32 %v1270, %v1274
    %v1276 = vmul.f32 %v1255, %v1275
    %vm1277 = vcmp.eq.f32.partialorder %v1255, inf
    %v1278 = vsel %vm1277, %v1255, %v1276
    %vm1279 = vcmp.eq.f32.partialorder %v1255, 0.0
    %v1280 = vand.u32 %v1255, 2147483648
    %v1281 = vsel %vm1279, %v1280, %v1278
    %v1282 = vrsqrt.pop %v1256
    %v1283 = vmul.f32 %v1282, %v1256
    %v1284 = vmul.f32 %v1283, %v1282
    %v1285 = vmul.f32 0.5, %v1284
    %v1286 = vsub.f32 1.5, %v1285
    %v1287 = vmul.f32 %v1282, %v1286
    %v1288 = vmul.f32 %v1256, %v1287
    %vm1289 = vcmp.eq.f32.partialorder %v1256, inf
    %v1290 = vsel %vm1289, %v1256, %v1288
    %vm1291 = vcmp.eq.f32.partialorder %v1256, 0.0
    %v1292 = vand.u32 %v1256, 2147483648
    %v1293 = vsel %vm1291, %v1292, %v1290
    %v1294 = vrsqrt.pop %v1257
    %v1295 = vmul.f32 %v1294, %v1257
    %v1296 = vmul.f32 %v1295, %v1294
    %v1297 = vmul.f32 0.5, %v1296
    %v1298 = vsub.f32 1.5, %v1297
    %v1299 = vmul.f32 %v1294, %v1298
    %v1300 = vmul.f32 %v1257, %v1299
    %vm1301 = vcmp.eq.f32.partialorder %v1257, inf
    %v1302 = vsel %vm1301, %v1257, %v1300
    %vm1303 = vcmp.eq.f32.partialorder %v1257, 0.0
    %v1304 = vand.u32 %v1257, 2147483648
    %v1305 = vsel %vm1303, %v1304, %v1302
    %v1306 = vadd.f32 %v1269, 1e-08
    %v1307 = vadd.f32 %v1281, 1e-08
    %v1308 = vadd.f32 %v1293, 1e-08
    %v1309 = vadd.f32 %v1305, 1e-08
    %v1310 = vrcp.pop %v1306
    %v1311 = vrcp.pop %v1307
    %v1312 = vrcp.pop %v1308
    %v1313 = vrcp.pop %v1309
    %v1314 = vmul.f32 %v1227, %v1310
    %v1315 = vmul.f32 %v1230, %v1311
    %v1316 = vmul.f32 %v1233, %v1312
    %v1317 = vmul.f32 %v1236, %v1313
    %s1318 = sld [smem:[#allocation2]]
    %v1319 = vld [vmem:[#allocation6] sm:$0xff]
    %v1320 = vld [vmem:[#allocation6 + $0x8] sm:$0xff]
    %v1321 = vld [vmem:[#allocation6 + $0x10] sm:$0xff]
    %v1322 = vld [vmem:[#allocation6 + $0x18] sm:$0xff]
    %v1323 = vld [vmem:[#allocation6 + $0x20] sm:$0xff]
    %v1324 = vld [vmem:[#allocation6 + $0x28] sm:$0xff]
    %v1325 = vld [vmem:[#allocation6 + $0x30] sm:$0xff]
    %v1326 = vld [vmem:[#allocation6 + $0x38] sm:$0xff]
    %v1327 = vld [vmem:[#allocation6 + $0x40] sm:$0xff]
    %v1328 = vld [vmem:[#allocation6 + $0x48] sm:$0xff]
    %v1329 = vld [vmem:[#allocation6 + $0x50] sm:$0xff]
    %v1330 = vld [vmem:[#allocation6 + $0x58] sm:$0xff]
    %v1331 = vld [vmem:[#allocation6 + $0x60] sm:$0xff]
    %v1332 = vld [vmem:[#allocation6 + $0x68] sm:$0xff]
    %v1333 = vld [vmem:[#allocation6 + $0x70] sm:$0xff]
    %v1334 = vld [vmem:[#allocation6 + $0x78] sm:$0xff]
    %v1335 = vld [vmem:[#allocation6 + $0x80] sm:$0xff]
    %v1336 = vld [vmem:[#allocation6 + $0x88] sm:$0xff]
    %v1337 = vld [vmem:[#allocation6 + $0x90] sm:$0xff]
    %v1338 = vld [vmem:[#allocation6 + $0x98] sm:$0xff]
    %v1339 = vld [vmem:[#allocation6 + $0xa0] sm:$0xff]
    %v1340 = vld [vmem:[#allocation6 + $0xa8] sm:$0xff]
    %v1341 = vld [vmem:[#allocation6 + $0xb0] sm:$0xff]
    %v1342 = vld [vmem:[#allocation6 + $0xb8] sm:$0xff]
    %v1343 = vld [vmem:[#allocation6 + $0xc0] sm:$0xff]
    %v1344 = vld [vmem:[#allocation6 + $0xc8] sm:$0xff]
    %v1345 = vld [vmem:[#allocation6 + $0xd0] sm:$0xff]
    %v1346 = vld [vmem:[#allocation6 + $0xd8] sm:$0xff]
    %v1347 = vld [vmem:[#allocation6 + $0xe0] sm:$0xff]
    %v1348 = vld [vmem:[#allocation6 + $0xe8] sm:$0xff]
    %v1349 = vld [vmem:[#allocation6 + $0xf0] sm:$0xff]
    %v1350 = vld [vmem:[#allocation6 + $0xf8] sm:$0xff]
    %v1352 = vsel %vm77, %v1314, 0
    %v1355 = vsel %vm77, %v1315, 0
    %v1358 = vsel %vm77, %v1316, 0
    %v1361 = vsel %vm77, %v1317, 0
    %1363 = vmatpush.msra.mxu0 0.0
    %1364 = vmatpush.msra.mxu0 0.0
    %1365 = vmatpush.msra.mxu0 0.0
    %1366 = vmatpush.msra.mxu0 0.0
    %1367 = vmatpush.msra.mxu0 0.0
    %1368 = vmatpush.msra.mxu0 0.0
    %1369 = vmatpush.msra.mxu0 0.0
    %1370 = vmatpush.msra.mxu0 0.0
    %1371 = vmatpush.msra.mxu0 %v1347
    %1372 = vmatpush.msra.mxu0 %v1343
    %1373 = vmatpush.msra.mxu0 %v1339
    %1374 = vmatpush.msra.mxu0 %v1335
    %1375 = vmatpush.msra.mxu0 %v1331
    %1376 = vmatpush.msra.mxu0 %v1327
    %1377 = vmatpush.msra.mxu0 %v1323
    %1378 = vmatpush.msra.mxu0 %v1319
    %1379 = vmatmul.f32.gmra.mxu0 %v1352
    %v1380 = vpop.f32.mrf.mxu0
    %v1381 = vadd.f32 0.0, %v1380
    %1382 = vmatmul.f32.gmra.mxu0 %v1355
    %v1383 = vpop.f32.mrf.mxu0
    %v1384 = vadd.f32 0.0, %v1383
    %1385 = vmatmul.f32.gmra.mxu0 %v1358
    %v1386 = vpop.f32.mrf.mxu0
    %v1387 = vadd.f32 0.0, %v1386
    %1388 = vmatmul.f32.gmra.mxu0 %v1361
    %v1389 = vpop.f32.mrf.mxu0
    %v1390 = vadd.f32 0.0, %v1389
    %1391 = vdwg.mxu0
    %1392 = vmatpush.msra.mxu0 0.0
    %1393 = vmatpush.msra.mxu0 0.0
    %1394 = vmatpush.msra.mxu0 0.0
    %1395 = vmatpush.msra.mxu0 0.0
    %1396 = vmatpush.msra.mxu0 0.0
    %1397 = vmatpush.msra.mxu0 0.0
    %1398 = vmatpush.msra.mxu0 0.0
    %1399 = vmatpush.msra.mxu0 0.0
    %1400 = vmatpush.msra.mxu0 %v1348
    %1401 = vmatpush.msra.mxu0 %v1344
    %1402 = vmatpush.msra.mxu0 %v1340
    %1403 = vmatpush.msra.mxu0 %v1336
    %1404 = vmatpush.msra.mxu0 %v1332
    %1405 = vmatpush.msra.mxu0 %v1328
    %1406 = vmatpush.msra.mxu0 %v1324
    %1407 = vmatpush.msra.mxu0 %v1320
    %1408 = vmatmul.f32.gmra.mxu0 %v1352
    %v1409 = vpop.f32.mrf.mxu0
    %v1410 = vadd.f32 0.0, %v1409
    %1411 = vmatmul.f32.gmra.mxu0 %v1355
    %v1412 = vpop.f32.mrf.mxu0
    %v1413 = vadd.f32 0.0, %v1412
    %1414 = vmatmul.f32.gmra.mxu0 %v1358
    %v1415 = vpop.f32.mrf.mxu0
    %v1416 = vadd.f32 0.0, %v1415
    %1417 = vmatmul.f32.gmra.mxu0 %v1361
    %v1418 = vpop.f32.mrf.mxu0
    %v1419 = vadd.f32 0.0, %v1418
    %1420 = vdwg.mxu0
    %1421 = vmatpush.msra.mxu0 0.0
    %1422 = vmatpush.msra.mxu0 0.0
    %1423 = vmatpush.msra.mxu0 0.0
    %1424 = vmatpush.msra.mxu0 0.0
    %1425 = vmatpush.msra.mxu0 0.0
    %1426 = vmatpush.msra.mxu0 0.0
    %1427 = vmatpush.msra.mxu0 0.0
    %1428 = vmatpush.msra.mxu0 0.0
    %1429 = vmatpush.msra.mxu0 %v1349
    %1430 = vmatpush.msra.mxu0 %v1345
    %1431 = vmatpush.msra.mxu0 %v1341
    %1432 = vmatpush.msra.mxu0 %v1337
    %1433 = vmatpush.msra.mxu0 %v1333
    %1434 = vmatpush.msra.mxu0 %v1329
    %1435 = vmatpush.msra.mxu0 %v1325
    %1436 = vmatpush.msra.mxu0 %v1321
    %1437 = vmatmul.f32.gmra.mxu0 %v1352
    %v1438 = vpop.f32.mrf.mxu0
    %v1439 = vadd.f32 0.0, %v1438
    %1440 = vmatmul.f32.gmra.mxu0 %v1355
    %v1441 = vpop.f32.mrf.mxu0
    %v1442 = vadd.f32 0.0, %v1441
    %1443 = vmatmul.f32.gmra.mxu0 %v1358
    %v1444 = vpop.f32.mrf.mxu0
    %v1445 = vadd.f32 0.0, %v1444
    %1446 = vmatmul.f32.gmra.mxu0 %v1361
    %v1447 = vpop.f32.mrf.mxu0
    %v1448 = vadd.f32 0.0, %v1447
    %1449 = vdwg.mxu0
    %1450 = vmatpush.msra.mxu0 0.0
    %1451 = vmatpush.msra.mxu0 0.0
    %1452 = vmatpush.msra.mxu0 0.0
    %1453 = vmatpush.msra.mxu0 0.0
    %1454 = vmatpush.msra.mxu0 0.0
    %1455 = vmatpush.msra.mxu0 0.0
    %1456 = vmatpush.msra.mxu0 0.0
    %1457 = vmatpush.msra.mxu0 0.0
    %1458 = vmatpush.msra.mxu0 %v1350
    %1459 = vmatpush.msra.mxu0 %v1346
    %1460 = vmatpush.msra.mxu0 %v1342
    %1461 = vmatpush.msra.mxu0 %v1338
    %1462 = vmatpush.msra.mxu0 %v1334
    %1463 = vmatpush.msra.mxu0 %v1330
    %1464 = vmatpush.msra.mxu0 %v1326
    %1465 = vmatpush.msra.mxu0 %v1322
    %1466 = vmatmul.f32.gmra.mxu0 %v1352
    %v1467 = vpop.f32.mrf.mxu0
    %v1468 = vadd.f32 0.0, %v1467
    %1469 = vmatmul.f32.gmra.mxu0 %v1355
    %v1470 = vpop.f32.mrf.mxu0
    %v1471 = vadd.f32 0.0, %v1470
    %1472 = vmatmul.f32.gmra.mxu0 %v1358
    %v1473 = vpop.f32.mrf.mxu0
    %v1474 = vadd.f32 0.0, %v1473
    %1475 = vmatmul.f32.gmra.mxu0 %v1361
    %v1476 = vpop.f32.mrf.mxu0
    %v1477 = vadd.f32 0.0, %v1476
    %1478 = vdwg.mxu0
    %v1479 = vstv %s1318
    %v1480 = vmul.f32 %v1381, %v1479
    %v1481 = vmul.f32 %v1410, %v1479
    %v1482 = vmul.f32 %v1384, %v1479
    %v1483 = vmul.f32 %v1413, %v1479
    %v1484 = vmul.f32 %v1387, %v1479
    %v1485 = vmul.f32 %v1416, %v1479
    %v1486 = vmul.f32 %v1390, %v1479
    %v1487 = vmul.f32 %v1419, %v1479
    %v1488 = vxor.u32 %v1480, 2147483648
    %v1489 = vxor.u32 %v1481, 2147483648
    %v1490 = vxor.u32 %v1482, 2147483648
    %v1491 = vxor.u32 %v1483, 2147483648
    %v1492 = vxor.u32 %v1484, 2147483648
    %v1493 = vxor.u32 %v1485, 2147483648
    %v1494 = vxor.u32 %v1486, 2147483648
    %v1495 = vxor.u32 %v1487, 2147483648
    %v1496 = vmul.f32 %v1488, 1.442695
    %v1497 = vpow.pop %v1496
    %v1498 = vmul.f32 %v1489, 1.442695
    %v1499 = vpow.pop %v1498
    %v1500 = vmul.f32 %v1490, 1.442695
    %v1501 = vpow.pop %v1500
    %v1502 = vmul.f32 %v1491, 1.442695
    %v1503 = vpow.pop %v1502
    %v1504 = vmul.f32 %v1492, 1.442695
    %v1505 = vpow.pop %v1504
    %v1506 = vmul.f32 %v1493, 1.442695
    %v1507 = vpow.pop %v1506
    %v1508 = vmul.f32 %v1494, 1.442695
    %v1509 = vpow.pop %v1508
    %v1510 = vmul.f32 %v1495, 1.442695
    %v1511 = vpow.pop %v1510
    %v1512 = vadd.f32 %v1497, 1.0
    %v1513 = vadd.f32 %v1499, 1.0
    %v1514 = vadd.f32 %v1501, 1.0
    %v1515 = vadd.f32 %v1503, 1.0
    %v1516 = vadd.f32 %v1505, 1.0
    %v1517 = vadd.f32 %v1507, 1.0
    %v1518 = vadd.f32 %v1509, 1.0
    %v1519 = vadd.f32 %v1511, 1.0
    %v1520 = vrcp.pop %v1512
    %v1521 = vmul.f32 %v1512, %v1520
    %v1522 = vsub.f32 1.0, %v1521
    %v1523 = vmul.f32 %v1520, %v1522
    %v1524 = vadd.f32 %v1520, %v1523
    %vm1525 = vweird.f32 %v1512
    %vm1526 = vweird.f32 %v1520
    %vm1527 = vmor %vm1525, %vm1526
    %v1528 = vsel %vm1527, %v1520, %v1524
    %v1529 = vand.u32 2147483647, %v1512
    %vm1530 = vcmp.eq.f32.partialorder %v1529, 8.507059e+37
    %v1531 = vand.u32 %v1512, 2147483648
    %v1532 = vor.u32 1.1754944e-38, %v1531
    %v1533 = vsel %vm1530, %v1532, %v1528
    %v1534 = vmul.f32 1.0, %v1533
    %v1535 = vrcp.pop %v1513
    %v1536 = vmul.f32 %v1513, %v1535
    %v1537 = vsub.f32 1.0, %v1536
    %v1538 = vmul.f32 %v1535, %v1537
    %v1539 = vadd.f32 %v1535, %v1538
    %vm1540 = vweird.f32 %v1513
    %vm1541 = vweird.f32 %v1535
    %vm1542 = vmor %vm1540, %vm1541
    %v1543 = vsel %vm1542, %v1535, %v1539
    %v1544 = vand.u32 2147483647, %v1513
    %vm1545 = vcmp.eq.f32.partialorder %v1544, 8.507059e+37
    %v1546 = vand.u32 %v1513, 2147483648
    %v1547 = vor.u32 1.1754944e-38, %v1546
    %v1548 = vsel %vm1545, %v1547, %v1543
    %v1549 = vmul.f32 1.0, %v1548
    %v1550 = vrcp.pop %v1514
    %v1551 = vmul.f32 %v1514, %v1550
    %v1552 = vsub.f32 1.0, %v1551
    %v1553 = vmul.f32 %v1550, %v1552
    %v1554 = vadd.f32 %v1550, %v1553
    %vm1555 = vweird.f32 %v1514
    %vm1556 = vweird.f32 %v1550
    %vm1557 = vmor %vm1555, %vm1556
    %v1558 = vsel %vm1557, %v1550, %v1554
    %v1559 = vand.u32 2147483647, %v1514
    %vm1560 = vcmp.eq.f32.partialorder %v1559, 8.507059e+37
    %v1561 = vand.u32 %v1514, 2147483648
    %v1562 = vor.u32 1.1754944e-38, %v1561
    %v1563 = vsel %vm1560, %v1562, %v1558
    %v1564 = vmul.f32 1.0, %v1563
    %v1565 = vrcp.pop %v1515
    %v1566 = vmul.f32 %v1515, %v1565
    %v1567 = vsub.f32 1.0, %v1566
    %v1568 = vmul.f32 %v1565, %v1567
    %v1569 = vadd.f32 %v1565, %v1568
    %vm1570 = vweird.f32 %v1515
    %vm1571 = vweird.f32 %v1565
    %vm1572 = vmor %vm1570, %vm1571
    %v1573 = vsel %vm1572, %v1565, %v1569
    %v1574 = vand.u32 2147483647, %v1515
    %vm1575 = vcmp.eq.f32.partialorder %v1574, 8.507059e+37
    %v1576 = vand.u32 %v1515, 2147483648
    %v1577 = vor.u32 1.1754944e-38, %v1576
    %v1578 = vsel %vm1575, %v1577, %v1573
    %v1579 = vmul.f32 1.0, %v1578
    %v1580 = vrcp.pop %v1516
    %v1581 = vmul.f32 %v1516, %v1580
    %v1582 = vsub.f32 1.0, %v1581
    %v1583 = vmul.f32 %v1580, %v1582
    %v1584 = vadd.f32 %v1580, %v1583
    %vm1585 = vweird.f32 %v1516
    %vm1586 = vweird.f32 %v1580
    %vm1587 = vmor %vm1585, %vm1586
    %v1588 = vsel %vm1587, %v1580, %v1584
    %v1589 = vand.u32 2147483647, %v1516
    %vm1590 = vcmp.eq.f32.partialorder %v1589, 8.507059e+37
    %v1591 = vand.u32 %v1516, 2147483648
    %v1592 = vor.u32 1.1754944e-38, %v1591
    %v1593 = vsel %vm1590, %v1592, %v1588
    %v1594 = vmul.f32 1.0, %v1593
    %v1595 = vrcp.pop %v1517
    %v1596 = vmul.f32 %v1517, %v1595
    %v1597 = vsub.f32 1.0, %v1596
    %v1598 = vmul.f32 %v1595, %v1597
    %v1599 = vadd.f32 %v1595, %v1598
    %vm1600 = vweird.f32 %v1517
    %vm1601 = vweird.f32 %v1595
    %vm1602 = vmor %vm1600, %vm1601
    %v1603 = vsel %vm1602, %v1595, %v1599
    %v1604 = vand.u32 2147483647, %v1517
    %vm1605 = vcmp.eq.f32.partialorder %v1604, 8.507059e+37
    %v1606 = vand.u32 %v1517, 2147483648
    %v1607 = vor.u32 1.1754944e-38, %v1606
    %v1608 = vsel %vm1605, %v1607, %v1603
    %v1609 = vmul.f32 1.0, %v1608
    %v1610 = vrcp.pop %v1518
    %v1611 = vmul.f32 %v1518, %v1610
    %v1612 = vsub.f32 1.0, %v1611
    %v1613 = vmul.f32 %v1610, %v1612
    %v1614 = vadd.f32 %v1610, %v1613
    %vm1615 = vweird.f32 %v1518
    %vm1616 = vweird.f32 %v1610
    %vm1617 = vmor %vm1615, %vm1616
    %v1618 = vsel %vm1617, %v1610, %v1614
    %v1619 = vand.u32 2147483647, %v1518
    %vm1620 = vcmp.eq.f32.partialorder %v1619, 8.507059e+37
    %v1621 = vand.u32 %v1518, 2147483648
    %v1622 = vor.u32 1.1754944e-38, %v1621
    %v1623 = vsel %vm1620, %v1622, %v1618
    %v1624 = vmul.f32 1.0, %v1623
    %v1625 = vrcp.pop %v1519
    %v1626 = vmul.f32 %v1519, %v1625
    %v1627 = vsub.f32 1.0, %v1626
    %v1628 = vmul.f32 %v1625, %v1627
    %v1629 = vadd.f32 %v1625, %v1628
    %vm1630 = vweird.f32 %v1519
    %vm1631 = vweird.f32 %v1625
    %vm1632 = vmor %vm1630, %vm1631
    %v1633 = vsel %vm1632, %v1625, %v1629
    %v1634 = vand.u32 2147483647, %v1519
    %vm1635 = vcmp.eq.f32.partialorder %v1634, 8.507059e+37
    %v1636 = vand.u32 %v1519, 2147483648
    %v1637 = vor.u32 1.1754944e-38, %v1636
    %v1638 = vsel %vm1635, %v1637, %v1633
    %v1639 = vmul.f32 1.0, %v1638
    %v1640 = vmul.f32 %v1381, %v1534
    %v1641 = vmul.f32 %v1410, %v1549
    %v1642 = vmul.f32 %v1384, %v1564
    %v1643 = vmul.f32 %v1413, %v1579
    %v1644 = vmul.f32 %v1387, %v1594
    %v1645 = vmul.f32 %v1416, %v1609
    %v1646 = vmul.f32 %v1390, %v1624
    %v1647 = vmul.f32 %v1419, %v1639
    %v1648 = vmul.f32 %v1640, %v1439
    %v1649 = vmul.f32 %v1641, %v1468
    %v1650 = vmul.f32 %v1642, %v1442
    %v1651 = vmul.f32 %v1643, %v1471
    %v1652 = vmul.f32 %v1644, %v1445
    %v1653 = vmul.f32 %v1645, %v1474
    %v1654 = vmul.f32 %v1646, %v1448
    %v1655 = vmul.f32 %v1647, %v1477
    %v1656 = vld [vmem:[%s8] sm:$0xff]
    %v1657 = vld [vmem:[%s8 + $0x8] sm:$0xff]
    %v1658 = vld [vmem:[%s8 + $0x10] sm:$0xff]
    %v1659 = vld [vmem:[%s8 + $0x18] sm:$0xff]
    %v1660 = vld [vmem:[%s8 + $0x20] sm:$0xff]
    %v1661 = vld [vmem:[%s8 + $0x28] sm:$0xff]
    %v1662 = vld [vmem:[%s8 + $0x30] sm:$0xff]
    %v1663 = vld [vmem:[%s8 + $0x38] sm:$0xff]
    %v1664 = vld [vmem:[%s8 + $0x40] sm:$0xff]
    %v1665 = vld [vmem:[%s8 + $0x48] sm:$0xff]
    %v1666 = vld [vmem:[%s8 + $0x50] sm:$0xff]
    %v1667 = vld [vmem:[%s8 + $0x58] sm:$0xff]
    %v1668 = vld [vmem:[%s8 + $0x60] sm:$0xff]
    %v1669 = vld [vmem:[%s8 + $0x68] sm:$0xff]
    %v1670 = vld [vmem:[%s8 + $0x70] sm:$0xff]
    %v1671 = vld [vmem:[%s8 + $0x78] sm:$0xff]
    %v1672 = vld [vmem:[%s8 + $0x80] sm:$0xff]
    %v1673 = vld [vmem:[%s8 + $0x88] sm:$0xff]
    %v1674 = vld [vmem:[%s8 + $0x90] sm:$0xff]
    %v1675 = vld [vmem:[%s8 + $0x98] sm:$0xff]
    %v1676 = vld [vmem:[%s8 + $0xa0] sm:$0xff]
    %v1677 = vld [vmem:[%s8 + $0xa8] sm:$0xff]
    %v1678 = vld [vmem:[%s8 + $0xb0] sm:$0xff]
    %v1679 = vld [vmem:[%s8 + $0xb8] sm:$0xff]
    %v1680 = vld [vmem:[%s8 + $0xc0] sm:$0xff]
    %v1681 = vld [vmem:[%s8 + $0xc8] sm:$0xff]
    %v1682 = vld [vmem:[%s8 + $0xd0] sm:$0xff]
    %v1683 = vld [vmem:[%s8 + $0xd8] sm:$0xff]
    %v1684 = vld [vmem:[%s8 + $0xe0] sm:$0xff]
    %v1685 = vld [vmem:[%s8 + $0xe8] sm:$0xff]
    %v1686 = vld [vmem:[%s8 + $0xf0] sm:$0xff]
    %v1687 = vld [vmem:[%s8 + $0xf8] sm:$0xff]
    %1688 = vmatpush.msra.mxu0 %v1671
    %1689 = vmatpush.msra.mxu0 %v1670
    %1690 = vmatpush.msra.mxu0 %v1669
    %1691 = vmatpush.msra.mxu0 %v1668
    %1692 = vmatpush.msra.mxu0 %v1667
    %1693 = vmatpush.msra.mxu0 %v1666
    %1694 = vmatpush.msra.mxu0 %v1665
    %1695 = vmatpush.msra.mxu0 %v1664
    %1696 = vmatpush.msra.mxu0 %v1663
    %1697 = vmatpush.msra.mxu0 %v1662
    %1698 = vmatpush.msra.mxu0 %v1661
    %1699 = vmatpush.msra.mxu0 %v1660
    %1700 = vmatpush.msra.mxu0 %v1659
    %1701 = vmatpush.msra.mxu0 %v1658
    %1702 = vmatpush.msra.mxu0 %v1657
    %1703 = vmatpush.msra.mxu0 %v1656
    %1704 = vmatmul.f32.gmra.mxu0 %v1648
    %v1705 = vpop.f32.mrf.mxu0
    %v1706 = vadd.f32 %v1227, %v1705
    %1707 = vmatmul.f32.gmra.mxu0 %v1650
    %v1708 = vpop.f32.mrf.mxu0
    %v1709 = vadd.f32 %v1230, %v1708
    %1710 = vmatmul.f32.gmra.mxu0 %v1652
    %v1711 = vpop.f32.mrf.mxu0
    %v1712 = vadd.f32 %v1233, %v1711
    %1713 = vmatmul.f32.gmra.mxu0 %v1654
    %v1714 = vpop.f32.mrf.mxu0
    %v1715 = vadd.f32 %v1236, %v1714
    %1716 = vdwg.mxu0
    %1717 = vmatpush.msra.mxu0 %v1687
    %1718 = vmatpush.msra.mxu0 %v1686
    %1719 = vmatpush.msra.mxu0 %v1685
    %1720 = vmatpush.msra.mxu0 %v1684
    %1721 = vmatpush.msra.mxu0 %v1683
    %1722 = vmatpush.msra.mxu0 %v1682
    %1723 = vmatpush.msra.mxu0 %v1681
    %1724 = vmatpush.msra.mxu0 %v1680
    %1725 = vmatpush.msra.mxu0 %v1679
    %1726 = vmatpush.msra.mxu0 %v1678
    %1727 = vmatpush.msra.mxu0 %v1677
    %1728 = vmatpush.msra.mxu0 %v1676
    %1729 = vmatpush.msra.mxu0 %v1675
    %1730 = vmatpush.msra.mxu0 %v1674
    %1731 = vmatpush.msra.mxu0 %v1673
    %1732 = vmatpush.msra.mxu0 %v1672
    %1733 = vmatmul.f32.gmra.mxu0 %v1649
    %v1734 = vpop.f32.mrf.mxu0
    %v1735 = vadd.f32 %v1706, %v1734
    %1736 = vmatmul.f32.gmra.mxu0 %v1651
    %v1737 = vpop.f32.mrf.mxu0
    %v1738 = vadd.f32 %v1709, %v1737
    %1739 = vmatmul.f32.gmra.mxu0 %v1653
    %v1740 = vpop.f32.mrf.mxu0
    %v1741 = vadd.f32 %v1712, %v1740
    %1742 = vmatmul.f32.gmra.mxu0 %v1655
    %v1743 = vpop.f32.mrf.mxu0
    %v1744 = vadd.f32 %v1715, %v1743
    %1745 = vdwg.mxu0
    %1746 = vst.msk [vmem:[#allocation8] sm:$0xff] %vm77, %v1735
    %1747 = vst.msk [vmem:[#allocation8 + $0x8] sm:$0xff] %vm77, %v1738
    %1748 = vst.msk [vmem:[#allocation8 + $0x10] sm:$0xff] %vm77, %v1741
    %1749 = vst.msk [vmem:[#allocation8 + $0x18] sm:$0xff] %vm77, %v1744
    // Predicated region
    $region50: #{tpu_custom_call.1} parent=1 // pred_check
      _
    $region51: #{tpu_custom_call.1} parent=1 // pred_check_branch
      %1751 = sbr.rel (0) target = $region53
    $region52: #{tpu_custom_call.1} parent=1 // pred_region
      %1753 = vsyncadd [#allocation5], 0
      %s1754 = sshll.u32 [#allocation8], 4
      %s1755 = int_to_ptr.vmem [resolvable:$true] %s1754
      %s1756 = sshll.u32 %s10, 4
      %s1757 = int_to_ptr.hbm [resolvable:$true] %s1756
      %1762 = dma.vmem_to_hbm [thread:$0]  %s1755, 512, %s1757, [#allocation5], 128, 128, 8
    $region53: #{tpu_custom_call.1} parent=1 // pred_fallthru
      _
    // Predicated region
    $region54: #{tpu_custom_call.1} parent=1 // pred_check
      _
    $region55: #{tpu_custom_call.1} parent=1 // pred_check_branch
      %1764 = sbr.rel (0) target = $region57
    $region56: #{tpu_custom_call.1} parent=1 // pred_region
      %1766 = dma.done [#allocation5], 512
    $region57: #{tpu_custom_call.1} parent=1 // pred_fallthru
      _
    %1767 = vsyncpa [#allocation4], 1
    %1768 = vsyncpa [#allocation7], 1
    %1769 = vsyncpa [#allocation5], 1

</llo_original>
